<compile_context>
chip_gen: v7x
topology: tpu7x:2x2x1
jax: 0.10.0
libtpu: 0.0.40
codegen_flags: <defaults>
</compile_context>

<pallas_src>
import random
from functools import partial

import numpy as np
import jax
import jax.numpy as jnp
from jax import lax
from jax.experimental import pallas as pl
from jax.experimental.pallas import tpu as pltpu

_UNROLL = 4          # echoes per fori_loop step -> 4 independent partial accumulators
_MAX_ECHOES = 512    # static schedule capacity (worst case ~435 for default params)
_LANE = 128
_TILE_ROWS = 8       # row-tile (sublane) size; multiple of 8 for f32


# ----------------------------------------------------------------------------
# Host-side replica of RevEcho._reverb's RNG loop (consumes `rng` identically to
# the PyTorch module).  Produces (delays, amps) such that
#     reverb = sum_k amps[k] * shift_right(source, delays[k])
# Echoes whose cumulative delay >= length are exactly zero and are dropped (the
# RNG is still consumed so the stream stays aligned with the reference).
# ----------------------------------------------------------------------------
def _build_echo_schedule(rng, *, repeat, jitter, initial, first_delay, rt60,
                         sample_rate, length):
    delays, amps = [], []
    for _ in range(repeat):
        frac = 1.0
        amp = np.float32(initial)
        cum = 0
        while frac > 0.001:
            j = 1 + jitter * rng.uniform(-1, 1)
            delay = min(1 + int(j * first_delay * sample_rate), length)
            cum += delay
            if cum < length:
                delays.append(cum)
                amps.append(float(amp))
            j = 1 + jitter * rng.uniform(-1, 1)
            attenuation = 10 ** (-3 * j * first_delay / rt60)
            amp = np.float32(amp * np.float32(attenuation))  # emulate f32 chain
            frac *= attenuation
    return delays, amps


def _pack_schedules(sched_noise, sched_clean):
    """Pack two (delays, amps) schedules into fixed-shape arrays for SMEM."""
    dn, an = sched_noise
    dc, ac = sched_clean
    n = max(len(dn), len(dc))
    n_groups = -(-n // _UNROLL)
    cap = _MAX_ECHOES
    while cap < n_groups * _UNROLL:        # extremely rare; keeps shapes stable
        cap *= 2
    delays = np.zeros((2, cap), np.int32)  # padding: delay=0, amp=0 -> no-op
    amps = np.zeros((2, cap), np.float32)
    delays[0, :len(dn)] = dn
    amps[0, :len(an)] = an
    delays[1, :len(dc)] = dc
    amps[1, :len(ac)] = ac
    return (jnp.asarray(delays), jnp.asarray(amps),
            jnp.asarray([n_groups], np.int32))


# ----------------------------------------------------------------------------
# One-time probe: does dynamic pltpu.roll (shift from SMEM) lower on this
# backend, and does it follow np.roll direction?  +1 / -1 / 0(unsupported).
# ----------------------------------------------------------------------------
def _probe_dynamic_roll():
    try:
        def kernel(shift_ref, amp_ref, x_ref, o_ref):
            s = shift_ref[0, 1]
            o_ref[...] = pltpu.roll(x_ref[...], s, axis=1) * amp_ref[0, 1]

        n, shift = 512, 300
        x = jnp.broadcast_to(lax.iota(jnp.float32, n), (8, n))
        out = pl.pallas_call(
            kernel,
            out_shape=jax.ShapeDtypeStruct((8, n), jnp.float32),
            grid_spec=pltpu.PrefetchScalarGridSpec(
                num_scalar_prefetch=2,
                grid=(1,),
                in_specs=[pl.BlockSpec((8, n), lambda i, s, a: (0, 0))],
                out_specs=pl.BlockSpec((8, n), lambda i, s, a: (0, 0)),
            ),
        )(jnp.array([[0, shift, 0, 0]], jnp.int32),
          jnp.array([[0.0, 1.0, 0.0, 0.0]], jnp.float32),
          x)
        got = np.asarray(jax.block_until_ready(out))
        ref = np.asarray(x)
        if np.array_equal(got, np.roll(ref, shift, axis=1)):
            return 1
        if np.array_equal(got, np.roll(ref, -shift, axis=1)):
            return -1
        return 0
    except Exception:
        return 0


_ROLL_SIGN = None


def _get_roll_sign():
    global _ROLL_SIGN
    if _ROLL_SIGN is None:
        _ROLL_SIGN = _probe_dynamic_roll()
    return _ROLL_SIGN


def _set_roll_sign(v):
    global _ROLL_SIGN
    _ROLL_SIGN = v


# ----------------------------------------------------------------------------
# Dynamic-schedule kernel (compiles once per shape; schedule is runtime data).
# ----------------------------------------------------------------------------
def _make_dynamic_kernel(T, tile_rows, keep_clean, roll_sign):
    kc = jnp.float32(keep_clean)

    def kernel(delays_ref, amps_ref, ngroups_ref, wav_ref, out_ref):
        # hoisted once per grid step (JAX does not CSE broadcasts in loops)
        lane = lax.broadcasted_iota(jnp.int32, (tile_rows, T), 1)
        n_groups = ngroups_ref[0]

        def reverb(src, sidx):
            zeros = jnp.zeros((tile_rows, T), jnp.float32)

            def one_echo(slot, acc):
                d = delays_ref[sidx, slot]        # int32 scalar from SMEM
                amp = amps_ref[sidx, slot]        # f32 scalar from SMEM
                if roll_sign > 0:                 # pltpu.roll == np.roll
                    shift = d
                else:                             # opposite rotation direction
                    shift = (T - d) % T
                rolled = pltpu.roll(src, shift, axis=1)
                # zero-fill to the left of the echo front, scale, accumulate
                return acc + jnp.where(lane >= d, rolled * amp, jnp.float32(0.0))

            def body(g, accs):
                base = g * _UNROLL
                return tuple(one_echo(base + k, accs[k]) for k in range(_UNROLL))

            accs = lax.fori_loop(0, n_groups, body, (zeros,) * _UNROLL)
            return (accs[0] + accs[1]) + (accs[2] + accs[3])

        noise = wav_ref[0]
        clean = wav_ref[1]
        rev_n = reverb(noise, 0)
        rev_c = reverb(clean, 1)
        # noise += rev_noise ; noise += (1 - keep_clean) * rev_clean
        out_ref[0] = noise + rev_n + (jnp.float32(1.0) - kc) * rev_c
        # clean += keep_clean * rev_clean
        out_ref[1] = clean + kc * rev_c

    return kernel


@partial(jax.jit, static_argnames=("keep_clean", "tile_rows", "roll_sign"))
def _revecho_dynamic(wav2, delays, amps, ngroups, *, keep_clean, tile_rows,
                     roll_sign):
    _, R, T = wav2.shape
    kernel = _make_dynamic_kernel(T, tile_rows, keep_clean, roll_sign)
    return pl.pallas_call(
        kernel,
        out_shape=jax.ShapeDtypeStruct((2, R, T), wav2.dtype),
        grid_spec=pltpu.PrefetchScalarGridSpec(
            num_scalar_prefetch=3,
            grid=(R // tile_rows,),
            in_specs=[pl.BlockSpec((2, tile_rows, T),
                                   lambda i, d, a, n: (0, i, 0))],
            out_specs=pl.BlockSpec((2, tile_rows, T),
                                   lambda i, d, a, n: (0, i, 0)),
        ),
        compiler_params=pltpu.CompilerParams(
            dimension_semantics=("parallel",)),
        # TODO(synk): input_output_aliases could reuse the wav buffer for the
        # output (one fewer HBM alloc/copy); left out to keep the call simple.
        # For very long T (e.g. 64k samples) raise vmem_limit_bytes here.
    )(delays, amps, ngroups, wav2)


# ----------------------------------------------------------------------------
# Static fallback (schedule baked in; only used if dynamic roll is unavailable).
# Still uses the improved structure: one zero-padded staging slab, static
# slices, and 4 round-robin partial accumulators.
# ----------------------------------------------------------------------------
def _make_static_kernel(T, tile_rows, keep_clean, sched_noise, sched_clean):
    kc = float(keep_clean)

    def reverb(src, delays, amps):
        zeros = jnp.zeros((tile_rows, T), jnp.float32)
        if not delays:
            return zeros
        staging = jnp.concatenate([zeros, src], axis=1)      # (TR, 2T)
        accs = [zeros] * _UNROLL
        for k, (d, a) in enumerate(zip(delays, amps)):
            shifted = lax.slice(staging, (0, T - d), (tile_rows, 2 * T - d))
            accs[k % _UNROLL] = accs[k % _UNROLL] + jnp.float32(a) * shifted
        return (accs[0] + accs[1]) + (accs[2] + accs[3])

    def kernel(wav_ref, out_ref):
        noise = wav_ref[0]
        clean = wav_ref[1]
        rev_n = reverb(noise, *sched_noise)
        rev_c = reverb(clean, *sched_clean)
        out_ref[0] = noise + rev_n + jnp.float32(1.0 - kc) * rev_c
        out_ref[1] = clean + jnp.float32(kc) * rev_c

    return kernel


def _revecho_static(wav2, sched_noise, sched_clean, keep_clean, tile_rows):
    _, R, T = wav2.shape
    kernel = _make_static_kernel(T, tile_rows, keep_clean, sched_noise,
                                 sched_clean)
    return pl.pallas_call(
        kernel,
        out_shape=jax.ShapeDtypeStruct((2, R, T), wav2.dtype),
        grid=(R // tile_rows,),
        in_specs=[pl.BlockSpec((2, tile_rows, T), lambda i: (0, i, 0))],
        out_specs=pl.BlockSpec((2, tile_rows, T), lambda i: (0, i, 0)),
        compiler_params=pltpu.CompilerParams(
            dimension_semantics=("parallel",)),
    )(wav2)


# ----------------------------------------------------------------------------
# RevEcho module (JAX / Pallas version)
# ----------------------------------------------------------------------------
class RevEchoPallas:
    def __init__(self, proba=0.5, initial=0.3, rt60=(0.3, 1.3),
                 first_delay=(0.01, 0.03), repeat=3, jitter=0.1,
                 keep_clean=0.1, sample_rate=16000, rng=None, seed=42,
                 tile_rows=_TILE_ROWS):
        self.proba = proba
        self.initial = initial
        self.rt60 = rt60
        self.first_delay = first_delay
        self.repeat = repeat
        self.jitter = jitter
        self.keep_clean = keep_clean
        self.sample_rate = sample_rate
        self.seed = seed
        self.rng = rng if rng is not None else random.Random(self.seed)
        self.tile_rows = tile_rows

    def __call__(self, wav):
        # wav: [2, B, C, T] float32, stacked (noise, clean).
        # TODO(synk): the `random.random() >= proba` gate and all augmentation
        # RNG stay host-side Python, mirroring the PyTorch module; there is no
        # clean in-kernel equivalent.
        if random.random() >= self.proba:
            return wav
        initial = random.random() * self.initial
        first_delay = random.uniform(*self.first_delay)
        rt60 = random.uniform(*self.rt60)

        two, B, C, T = wav.shape
        assert two == 2
        R = B * C
        common = dict(repeat=self.repeat, jitter=self.jitter, initial=initial,
                      first_delay=first_delay, rt60=rt60,
                      sample_rate=self.sample_rate, length=T)
        # _reverb(noise) consumes self.rng first, then _reverb(clean)
        sched_noise = _build_echo_schedule(self.rng, **common)
        sched_clean = _build_echo_schedule(self.rng, **common)

        tr = self.tile_rows
        r_pad = -(-R // tr) * tr               # rows  -> multiple of tile_rows
        t_pad = -(-T // _LANE) * _LANE         # lanes -> multiple of 128
        wav2 = wav.reshape(2, R, T)
        if (r_pad, t_pad) != (R, T):
            wav2 = jnp.pad(wav2, ((0, 0), (0, r_pad - R), (0, t_pad - T)))

        out = None
        sign = _get_roll_sign()
        if sign != 0:
            delays, amps, ngroups = _pack_schedules(sched_noise, sched_clean)
            try:
                out = _revecho_dynamic(wav2, delays, amps, ngroups,
                                       keep_clean=float(self.keep_clean),
                                       tile_rows=tr, roll_sign=sign)
            except Exception:
                _set_roll_sign(0)              # disable dynamic path for good
                out = None
        if out is None:
            # TODO(synk): fallback bakes the schedule into the program (one
            # recompile per fresh RNG draw); only used when dynamic pltpu.roll
            # is unavailable on this backend.
            out = _revecho_static(wav2, sched_noise, sched_clean,
                                  float(self.keep_clean), tr)

        out = out[:, :R, :T]
        return out.reshape(2, B, C, T)


# ----------------------------------------------------------------------------
# Pure-numpy reference (mirrors the PyTorch module op-for-op) for verification.
# ----------------------------------------------------------------------------
def _reverb_np(rng, source, initial, first_delay, rt60, repeat, jitter,
               sample_rate):
    length = source.shape[-1]
    reverb = np.zeros_like(source)
    for _ in range(repeat):
        frac = 1.0
        echo = initial * source
        while frac > 0.001:
            j = 1 + jitter * rng.uniform(-1, 1)
            delay = min(1 + int(j * first_delay * sample_rate), length)
            echo = np.concatenate(
                [np.zeros(echo.shape[:-1] + (delay,), echo.dtype),
                 echo[..., : length - delay]], axis=-1)
            reverb = reverb + echo
            j = 1 + jitter * rng.uniform(-1, 1)
            attenuation = 10 ** (-3 * j * first_delay / rt60)
            echo = echo * attenuation
            frac *= attenuation
    return reverb


def revecho_forward_np(wav, *, proba, initial_max, rt60_range, fd_range, repeat,
                       jitter, keep_clean, sample_rate, rng):
    if random.random() >= proba:
        return wav
    noise, clean = wav[0].copy(), wav[1].copy()
    initial = random.random() * initial_max
    fd = random.uniform(*fd_range)
    rt60 = random.uniform(*rt60_range)
    rev_n = _reverb_np(rng, noise, initial, fd, rt60, repeat, jitter, sample_rate)
    noise = noise + rev_n
    rev_c = _reverb_np(rng, clean, initial, fd, rt60, repeat, jitter, sample_rate)
    clean = clean + keep_clean * rev_c
    noise = noise + (1 - keep_clean) * rev_c
    return np.stack([noise, clean])


if __name__ == "__main__":
    # R = B*C = 16 rows -> 2 row tiles of 8 (full sublane occupancy), T = 2048
    # lanes (long enough for echoes with first_delay ~ 160-480 samples).
    B, C, T = 4, 4, 2048
    key = jax.random.PRNGKey(0)
    wav = 0.1 * jax.random.normal(key, (2, B, C, T), dtype=jnp.float32)

    # ---- Pallas runs (proba=1.0 so the reverb path is always exercised). ----
    # Two calls with fresh RNG draws: the second must reuse the compiled
    # dynamic-schedule kernel (the schedule is data, not constants).
    random.seed(0)
    module = RevEchoPallas(proba=1.0, rng=random.Random(42))
    out1 = jax.block_until_ready(module(wav))
    out2 = jax.block_until_ready(module(wav))

    # ---- numpy reference replaying the identical RNG streams. ----
    random.seed(0)
    rng_ref = random.Random(42)
    kwargs = dict(proba=1.0, initial_max=0.3, rt60_range=(0.3, 1.3),
                  fd_range=(0.01, 0.03), repeat=3, jitter=0.1, keep_clean=0.1,
                  sample_rate=16000, rng=rng_ref)
    ref1 = revecho_forward_np(np.asarray(wav, np.float32), **kwargs)
    ref2 = revecho_forward_np(np.asarray(wav, np.float32), **kwargs)

    np.testing.assert_allclose(np.asarray(out1), ref1, rtol=1e-4, atol=1e-5)
    np.testing.assert_allclose(np.asarray(out2), ref2, rtol=1e-4, atol=1e-5)
    print("KERNEL_OK")
</pallas_src>

<mosaic_0001>
module attributes {stable_mosaic.version = 11 : i64} {
  func.func @kernel(%arg0: i32, %arg1: memref<1x4xi32, #tpu.memory_space<smem>>, %arg2: memref<1x4xf32, #tpu.memory_space<smem>>, %arg3: memref<8x512xf32, #tpu.memory_space<vmem>>, %arg4: memref<8x512xf32, #tpu.memory_space<vmem>>) attributes {dimension_semantics = [#tpu.dimension_semantics<arbitrary>], iteration_bounds = array<i64: 1>, scalar_prefetch = 2 : i64, scratch_operands = 0 : i64, tpu.core_type = #tpu.core_type<tc>, window_params = [{pipeline_mode = #tpu.pipeline_mode<synchronous>, transform_indices = @transform_0, window_bounds = array<i64: 8, 512>}, {pipeline_mode = #tpu.pipeline_mode<synchronous>, transform_indices = @transform_1, window_bounds = array<i64: 8, 512>}]} {
    %c0 = arith.constant 0 : index
    %c1 = arith.constant 1 : index
    %0 = memref.load %arg1[%c0, %c1] : memref<1x4xi32, #tpu.memory_space<smem>>
    %c0_0 = arith.constant 0 : index
    %c0_1 = arith.constant 0 : index
    %1 = vector.load %arg3[%c0_0, %c0_1] : memref<8x512xf32, #tpu.memory_space<vmem>>, vector<8x512xf32>
    %2 = tpu.dynamic_rotate %1 by %0 dim 1 : vector<8x512xf32>, i32 -> vector<8x512xf32>
    %c0_2 = arith.constant 0 : index
    %c1_3 = arith.constant 1 : index
    %3 = memref.load %arg2[%c0_2, %c1_3] : memref<1x4xf32, #tpu.memory_space<smem>>
    %4 = vector.broadcast %3 : f32 to vector<8x512xf32>
    %5 = arith.mulf %2, %4 : vector<8x512xf32>
    %c0_4 = arith.constant 0 : index
    %c0_5 = arith.constant 0 : index
    %6 = vector.load %arg4[%c0_4, %c0_5] : memref<8x512xf32, #tpu.memory_space<vmem>>, vector<8x512xf32>
    tpu.vector_store %arg4[%c0_4, %c0_5], %5 {strides = array<i32>} : memref<8x512xf32, #tpu.memory_space<vmem>>, vector<8x512xf32>,
    return
  }
  func.func @transform_0(%arg0: i32, %arg1: memref<1x4xi32, #tpu.memory_space<smem>>, %arg2: memref<1x4xf32, #tpu.memory_space<smem>>) -> (i32, i32) {
    %c0_i32 = arith.constant 0 : i32
    %c0_i32_0 = arith.constant 0 : i32
    %c0_i32_1 = arith.constant 0 : i32
    return %c0_i32, %c0_i32_0 : i32, i32
  }
  func.func @transform_1(%arg0: i32, %arg1: memref<1x4xi32, #tpu.memory_space<smem>>, %arg2: memref<1x4xf32, #tpu.memory_space<smem>>) -> (i32, i32) {
    %c0_i32 = arith.constant 0 : i32
    %c0_i32_0 = arith.constant 0 : i32
    %c0_i32_1 = arith.constant 0 : i32
    return %c0_i32, %c0_i32_0 : i32, i32
  }
}

module attributes {stable_mosaic.version = 11 : i64} {
  func.func @kernel(%arg0: i32, %arg1: memref<2x8x2048xf32, #tpu.memory_space<vmem>>, %arg2: memref<2x8x2048xf32, #tpu.memory_space<vmem>>) attributes {dimension_semantics = [#tpu.dimension_semantics<parallel>], iteration_bounds = array<i64: 2>, scalar_prefetch = 0 : i64, scratch_operands = 0 : i64, tpu.core_type = #tpu.core_type<tc>, window_params = [{transform_indices = @transform_0, window_bounds = array<i64: 2, 8, 2048>}, {transform_indices = @transform_1, window_bounds = array<i64: 2, 8, 2048>}]} {
    %c0 = arith.constant 0 : index
    %c0_0 = arith.constant 0 : index
    %c0_1 = arith.constant 0 : index
    %0 = vector.load %arg1[%c0, %c0_0, %c0_1] : memref<2x8x2048xf32, #tpu.memory_space<vmem>>, vector<1x8x2048xf32>
    %1 = vector.shape_cast %0 : vector<1x8x2048xf32> to vector<8x2048xf32>
    %c1 = arith.constant 1 : index
    %c0_2 = arith.constant 0 : index
    %c0_3 = arith.constant 0 : index
    %2 = vector.load %arg1[%c1, %c0_2, %c0_3] : memref<2x8x2048xf32, #tpu.memory_space<vmem>>, vector<1x8x2048xf32>
    %3 = vector.shape_cast %2 : vector<1x8x2048xf32> to vector<8x2048xf32>
    %cst = arith.constant 0.000000e+00 : f32
    %4 = vector.broadcast %cst : f32 to vector<8x2048xf32>
    %5 = tpu.concatenate %4, %1 in 1 : vector<8x2048xf32>, vector<8x2048xf32> -> vector<8x4096xf32>
    %6 = vector.extract_strided_slice %5 {offsets = [0, 1745], sizes = [8, 2048], strides = [1, 1]} : vector<8x4096xf32> to vector<8x2048xf32>
    %cst_4 = arith.constant 0.227386326 : f32
    %7 = vector.broadcast %cst_4 : f32 to vector<8x2048xf32>
    %8 = arith.mulf %7, %6 : vector<8x2048xf32>
    %9 = arith.addf %4, %8 : vector<8x2048xf32>
    %10 = vector.extract_strided_slice %5 {offsets = [0, 1463], sizes = [8, 2048], strides = [1, 1]} : vector<8x4096xf32> to vector<8x2048xf32>
    %cst_5 = arith.constant 0.185066819 : f32
    %11 = vector.broadcast %cst_5 : f32 to vector<8x2048xf32>
    %12 = arith.mulf %11, %10 : vector<8x2048xf32>
    %13 = arith.addf %4, %12 : vector<8x2048xf32>
    %14 = vector.extract_strided_slice %5 {offsets = [0, 1154], sizes = [8, 2048], strides = [1, 1]} : vector<8x4096xf32> to vector<8x2048xf32>
    %cst_6 = arith.constant 0.149270982 : f32
    %15 = vector.broadcast %cst_6 : f32 to vector<8x2048xf32>
    %16 = arith.mulf %15, %14 : vector<8x2048xf32>
    %17 = arith.addf %4, %16 : vector<8x2048xf32>
    %18 = vector.extract_strided_slice %5 {offsets = [0, 836], sizes = [8, 2048], strides = [1, 1]} : vector<8x4096xf32> to vector<8x2048xf32>
    %cst_7 = arith.constant 0.117939465 : f32
    %19 = vector.broadcast %cst_7 : f32 to vector<8x2048xf32>
    %20 = arith.mulf %19, %18 : vector<8x2048xf32>
    %21 = arith.addf %4, %20 : vector<8x2048xf32>
    %22 = vector.extract_strided_slice %5 {offsets = [0, 546], sizes = [8, 2048], strides = [1, 1]} : vector<8x4096xf32> to vector<8x2048xf32>
    %cst_8 = arith.constant 0.0957192704 : f32
    %23 = vector.broadcast %cst_8 : f32 to vector<8x2048xf32>
    %24 = arith.mulf %23, %22 : vector<8x2048xf32>
    %25 = arith.addf %9, %24 : vector<8x2048xf32>
    %26 = vector.extract_strided_slice %5 {offsets = [0, 267], sizes = [8, 2048], strides = [1, 1]} : vector<8x4096xf32> to vector<8x2048xf32>
    %cst_9 = arith.constant 0.0778877213 : f32
    %27 = vector.broadcast %cst_9 : f32 to vector<8x2048xf32>
    %28 = arith.mulf %27, %26 : vector<8x2048xf32>
    %29 = arith.addf %13, %28 : vector<8x2048xf32>
    %30 = vector.extract_strided_slice %5 {offsets = [0, 1750], sizes = [8, 2048], strides = [1, 1]} : vector<8x4096xf32> to vector<8x2048xf32>
    %cst_10 = arith.constant 0.227386326 : f32
    %31 = vector.broadcast %cst_10 : f32 to vector<8x2048xf32>
    %32 = arith.mulf %31, %30 : vector<8x2048xf32>
    %33 = arith.addf %17, %32 : vector<8x2048xf32>
    %34 = vector.extract_strided_slice %5 {offsets = [0, 1435], sizes = [8, 2048], strides = [1, 1]} : vector<8x4096xf32> to vector<8x2048xf32>
    %cst_11 = arith.constant 0.179593936 : f32
    %35 = vector.broadcast %cst_11 : f32 to vector<8x2048xf32>
    %36 = arith.mulf %35, %34 : vector<8x2048xf32>
    %37 = arith.addf %21, %36 : vector<8x2048xf32>
    %38 = vector.extract_strided_slice %5 {offsets = [0, 1156], sizes = [8, 2048], strides = [1, 1]} : vector<8x4096xf32> to vector<8x2048xf32>
    %cst_12 = arith.constant 0.141257912 : f32
    %39 = vector.broadcast %cst_12 : f32 to vector<8x2048xf32>
    %40 = arith.mulf %39, %38 : vector<8x2048xf32>
    %41 = arith.addf %25, %40 : vector<8x2048xf32>
    %42 = vector.extract_strided_slice %5 {offsets = [0, 872], sizes = [8, 2048], strides = [1, 1]} : vector<8x4096xf32> to vector<8x2048xf32>
    %cst_13 = arith.constant 0.114930913 : f32
    %43 = vector.broadcast %cst_13 : f32 to vector<8x2048xf32>
    %44 = arith.mulf %43, %42 : vector<8x2048xf32>
    %45 = arith.addf %29, %44 : vector<8x2048xf32>
    %46 = vector.extract_strided_slice %5 {offsets = [0, 594], sizes = [8, 2048], strides = [1, 1]} : vector<8x4096xf32> to vector<8x2048xf32>
    %cst_14 = arith.constant 0.0925131738 : f32
    %47 = vector.broadcast %cst_14 : f32 to vector<8x2048xf32>
    %48 = arith.mulf %47, %46 : vector<8x2048xf32>
    %49 = arith.addf %33, %48 : vector<8x2048xf32>
    %50 = vector.extract_strided_slice %5 {offsets = [0, 277], sizes = [8, 2048], strides = [1, 1]} : vector<8x4096xf32> to vector<8x2048xf32>
    %cst_15 = arith.constant 0.0722147226 : f32
    %51 = vector.broadcast %cst_15 : f32 to vector<8x2048xf32>
    %52 = arith.mulf %51, %50 : vector<8x2048xf32>
    %53 = arith.addf %37, %52 : vector<8x2048xf32>
    %54 = vector.extract_strided_slice %5 {offsets = [0, 1782], sizes = [8, 2048], strides = [1, 1]} : vector<8x4096xf32> to vector<8x2048xf32>
    %cst_16 = arith.constant 0.227386326 : f32
    %55 = vector.broadcast %cst_16 : f32 to vector<8x2048xf32>
    %56 = arith.mulf %55, %54 : vector<8x2048xf32>
    %57 = arith.addf %41, %56 : vector<8x2048xf32>
    %58 = vector.extract_strided_slice %5 {offsets = [0, 1515], sizes = [8, 2048], strides = [1, 1]} : vector<8x4096xf32> to vector<8x2048xf32>
    %cst_17 = arith.constant 0.182564378 : f32
    %59 = vector.broadcast %cst_17 : f32 to vector<8x2048xf32>
    %60 = arith.mulf %59, %58 : vector<8x2048xf32>
    %61 = arith.addf %45, %60 : vector<8x2048xf32>
    %62 = vector.extract_strided_slice %5 {offsets = [0, 1198], sizes = [8, 2048], strides = [1, 1]} : vector<8x4096xf32> to vector<8x2048xf32>
    %cst_18 = arith.constant 0.142597258 : f32
    %63 = vector.broadcast %cst_18 : f32 to vector<8x2048xf32>
    %64 = arith.mulf %63, %62 : vector<8x2048xf32>
    %65 = arith.addf %49, %64 : vector<8x2048xf32>
    %66 = vector.extract_strided_slice %5 {offsets = [0, 914], sizes = [8, 2048], strides = [1, 1]} : vector<8x4096xf32> to vector<8x2048xf32>
    %cst_19 = arith.constant 0.111874737 : f32
    %67 = vector.broadcast %cst_19 : f32 to vector<8x2048xf32>
    %68 = arith.mulf %67, %66 : vector<8x2048xf32>
    %69 = arith.addf %53, %68 : vector<8x2048xf32>
    %70 = vector.extract_strided_slice %5 {offsets = [0, 597], sizes = [8, 2048], strides = [1, 1]} : vector<8x4096xf32> to vector<8x2048xf32>
    %cst_20 = arith.constant 0.0909171253 : f32
    %71 = vector.broadcast %cst_20 : f32 to vector<8x2048xf32>
    %72 = arith.mulf %71, %70 : vector<8x2048xf32>
    %73 = arith.addf %57, %72 : vector<8x2048xf32>
    %74 = vector.extract_strided_slice %5 {offsets = [0, 326], sizes = [8, 2048], strides = [1, 1]} : vector<8x4096xf32> to vector<8x2048xf32>
    %cst_21 = arith.constant 0.0709558204 : f32
    %75 = vector.broadcast %cst_21 : f32 to vector<8x2048xf32>
    %76 = arith.mulf %75, %74 : vector<8x2048xf32>
    %77 = arith.addf %61, %76 : vector<8x2048xf32>
    %78 = vector.extract_strided_slice %5 {offsets = [0, 56], sizes = [8, 2048], strides = [1, 1]} : vector<8x4096xf32> to vector<8x2048xf32>
    %cst_22 = arith.constant 0.0565511025 : f32
    %79 = vector.broadcast %cst_22 : f32 to vector<8x2048xf32>
    %80 = arith.mulf %79, %78 : vector<8x2048xf32>
    %81 = arith.addf %65, %80 : vector<8x2048xf32>
    %82 = arith.addf %73, %77 : vector<8x2048xf32>
    %83 = arith.addf %81, %69 : vector<8x2048xf32>
    %84 = arith.addf %82, %83 : vector<8x2048xf32>
    %cst_23 = arith.constant 0.000000e+00 : f32
    %85 = vector.broadcast %cst_23 : f32 to vector<8x2048xf32>
    %86 = tpu.concatenate %85, %3 in 1 : vector<8x2048xf32>, vector<8x2048xf32> -> vector<8x4096xf32>
    %87 = vector.extract_strided_slice %86 {offsets = [0, 1732], sizes = [8, 2048], strides = [1, 1]} : vector<8x4096xf32> to vector<8x2048xf32>
    %cst_24 = arith.constant 0.227386326 : f32
    %88 = vector.broadcast %cst_24 : f32 to vector<8x2048xf32>
    %89 = arith.mulf %88, %87 : vector<8x2048xf32>
    %90 = arith.addf %85, %89 : vector<8x2048xf32>
    %91 = vector.extract_strided_slice %86 {offsets = [0, 1455], sizes = [8, 2048], strides = [1, 1]} : vector<8x4096xf32> to vector<8x2048xf32>
    %cst_25 = arith.constant 0.18319273 : f32
    %92 = vector.broadcast %cst_25 : f32 to vector<8x2048xf32>
    %93 = arith.mulf %92, %91 : vector<8x2048xf32>
    %94 = arith.addf %85, %93 : vector<8x2048xf32>
    %95 = vector.extract_strided_slice %86 {offsets = [0, 1165], sizes = [8, 2048], strides = [1, 1]} : vector<8x4096xf32> to vector<8x2048xf32>
    %cst_26 = arith.constant 0.14625141 : f32
    %96 = vector.broadcast %cst_26 : f32 to vector<8x2048xf32>
    %97 = arith.mulf %96, %95 : vector<8x2048xf32>
    %98 = arith.addf %85, %97 : vector<8x2048xf32>
    %99 = vector.extract_strided_slice %86 {offsets = [0, 885], sizes = [8, 2048], strides = [1, 1]} : vector<8x4096xf32> to vector<8x2048xf32>
    %cst_27 = arith.constant 0.117666602 : f32
    %100 = vector.broadcast %cst_27 : f32 to vector<8x2048xf32>
    %101 = arith.mulf %100, %99 : vector<8x2048xf32>
    %102 = arith.addf %85, %101 : vector<8x2048xf32>
    %103 = vector.extract_strided_slice %86 {offsets = [0, 593], sizes = [8, 2048], strides = [1, 1]} : vector<8x4096xf32> to vector<8x2048xf32>
    %cst_28 = arith.constant 0.0919313431 : f32
    %104 = vector.broadcast %cst_28 : f32 to vector<8x2048xf32>
    %105 = arith.mulf %104, %103 : vector<8x2048xf32>
    %106 = arith.addf %90, %105 : vector<8x2048xf32>
    %107 = vector.extract_strided_slice %86 {offsets = [0, 295], sizes = [8, 2048], strides = [1, 1]} : vector<8x4096xf32> to vector<8x2048xf32>
    %cst_29 = arith.constant 0.0720274076 : f32
    %108 = vector.broadcast %cst_29 : f32 to vector<8x2048xf32>
    %109 = arith.mulf %108, %107 : vector<8x2048xf32>
    %110 = arith.addf %94, %109 : vector<8x2048xf32>
    %111 = vector.extract_strided_slice %86 {offsets = [0, 1768], sizes = [8, 2048], strides = [1, 1]} : vector<8x4096xf32> to vector<8x2048xf32>
    %cst_30 = arith.constant 0.227386326 : f32
    %112 = vector.broadcast %cst_30 : f32 to vector<8x2048xf32>
    %113 = arith.mulf %112, %111 : vector<8x2048xf32>
    %114 = arith.addf %98, %113 : vector<8x2048xf32>
    %115 = vector.extract_strided_slice %86 {offsets = [0, 1463], sizes = [8, 2048], strides = [1, 1]} : vector<8x4096xf32> to vector<8x2048xf32>
    %cst_31 = arith.constant 0.181970209 : f32
    %116 = vector.broadcast %cst_31 : f32 to vector<8x2048xf32>
    %117 = arith.mulf %116, %115 : vector<8x2048xf32>
    %118 = arith.addf %102, %117 : vector<8x2048xf32>
    %119 = vector.extract_strided_slice %86 {offsets = [0, 1179], sizes = [8, 2048], strides = [1, 1]} : vector<8x4096xf32> to vector<8x2048xf32>
    %cst_32 = arith.constant 0.14626132 : f32
    %120 = vector.broadcast %cst_32 : f32 to vector<8x2048xf32>
    %121 = arith.mulf %120, %119 : vector<8x2048xf32>
    %122 = arith.addf %106, %121 : vector<8x2048xf32>
    %123 = vector.extract_strided_slice %86 {offsets = [0, 909], sizes = [8, 2048], strides = [1, 1]} : vector<8x4096xf32> to vector<8x2048xf32>
    %cst_33 = arith.constant 0.11516688 : f32
    %124 = vector.broadcast %cst_33 : f32 to vector<8x2048xf32>
    %125 = arith.mulf %124, %123 : vector<8x2048xf32>
    %126 = arith.addf %110, %125 : vector<8x2048xf32>
    %127 = vector.extract_strided_slice %86 {offsets = [0, 585], sizes = [8, 2048], strides = [1, 1]} : vector<8x4096xf32> to vector<8x2048xf32>
    %cst_34 = arith.constant 0.0919026955 : f32
    %128 = vector.broadcast %cst_34 : f32 to vector<8x2048xf32>
    %129 = arith.mulf %128, %127 : vector<8x2048xf32>
    %130 = arith.addf %114, %129 : vector<8x2048xf32>
    %131 = vector.extract_strided_slice %86 {offsets = [0, 315], sizes = [8, 2048], strides = [1, 1]} : vector<8x4096xf32> to vector<8x2048xf32>
    %cst_35 = arith.constant 0.0715647563 : f32
    %132 = vector.broadcast %cst_35 : f32 to vector<8x2048xf32>
    %133 = arith.mulf %132, %131 : vector<8x2048xf32>
    %134 = arith.addf %118, %133 : vector<8x2048xf32>
    %135 = vector.extract_strided_slice %86 {offsets = [0, 34], sizes = [8, 2048], strides = [1, 1]} : vector<8x4096xf32> to vector<8x2048xf32>
    %cst_36 = arith.constant 0.0577490442 : f32
    %136 = vector.broadcast %cst_36 : f32 to vector<8x2048xf32>
    %137 = arith.mulf %136, %135 : vector<8x2048xf32>
    %138 = arith.addf %122, %137 : vector<8x2048xf32>
    %139 = vector.extract_strided_slice %86 {offsets = [0, 1735], sizes = [8, 2048], strides = [1, 1]} : vector<8x4096xf32> to vector<8x2048xf32>
    %cst_37 = arith.constant 0.227386326 : f32
    %140 = vector.broadcast %cst_37 : f32 to vector<8x2048xf32>
    %141 = arith.mulf %140, %139 : vector<8x2048xf32>
    %142 = arith.addf %126, %141 : vector<8x2048xf32>
    %143 = vector.extract_strided_slice %86 {offsets = [0, 1416], sizes = [8, 2048], strides = [1, 1]} : vector<8x4096xf32> to vector<8x2048xf32>
    %cst_38 = arith.constant 0.178160459 : f32
    %144 = vector.broadcast %cst_38 : f32 to vector<8x2048xf32>
    %145 = arith.mulf %144, %143 : vector<8x2048xf32>
    %146 = arith.addf %130, %145 : vector<8x2048xf32>
    %147 = vector.extract_strided_slice %86 {offsets = [0, 1136], sizes = [8, 2048], strides = [1, 1]} : vector<8x4096xf32> to vector<8x2048xf32>
    %cst_39 = arith.constant 0.143786386 : f32
    %148 = vector.broadcast %cst_39 : f32 to vector<8x2048xf32>
    %149 = arith.mulf %148, %147 : vector<8x2048xf32>
    %150 = arith.addf %134, %149 : vector<8x2048xf32>
    %151 = vector.extract_strided_slice %86 {offsets = [0, 824], sizes = [8, 2048], strides = [1, 1]} : vector<8x4096xf32> to vector<8x2048xf32>
    %cst_40 = arith.constant 0.116612367 : f32
    %152 = vector.broadcast %cst_40 : f32 to vector<8x2048xf32>
    %153 = arith.mulf %152, %151 : vector<8x2048xf32>
    %154 = arith.addf %138, %153 : vector<8x2048xf32>
    %155 = vector.extract_strided_slice %86 {offsets = [0, 534], sizes = [8, 2048], strides = [1, 1]} : vector<8x4096xf32> to vector<8x2048xf32>
    %cst_41 = arith.constant 0.0912700816 : f32
    %156 = vector.broadcast %cst_41 : f32 to vector<8x2048xf32>
    %157 = arith.mulf %156, %155 : vector<8x2048xf32>
    %158 = arith.addf %142, %157 : vector<8x2048xf32>
    %159 = vector.extract_strided_slice %86 {offsets = [0, 259], sizes = [8, 2048], strides = [1, 1]} : vector<8x4096xf32> to vector<8x2048xf32>
    %cst_42 = arith.constant 0.0722969174 : f32
    %160 = vector.broadcast %cst_42 : f32 to vector<8x2048xf32>
    %161 = arith.mulf %160, %159 : vector<8x2048xf32>
    %162 = arith.addf %146, %161 : vector<8x2048xf32>
    %163 = arith.addf %154, %158 : vector<8x2048xf32>
    %164 = arith.addf %162, %150 : vector<8x2048xf32>
    %165 = arith.addf %163, %164 : vector<8x2048xf32>
    %166 = arith.addf %1, %84 : vector<8x2048xf32>
    %cst_43 = arith.constant 0.899999976 : f32
    %167 = vector.broadcast %cst_43 : f32 to vector<8x2048xf32>
    %168 = arith.mulf %167, %165 : vector<8x2048xf32>
    %169 = arith.addf %166, %168 : vector<8x2048xf32>
    %c0_44 = arith.constant 0 : index
    %c0_45 = arith.constant 0 : index
    %c0_46 = arith.constant 0 : index
    %170 = vector.load %arg2[%c0_44, %c0_45, %c0_46] : memref<2x8x2048xf32, #tpu.memory_space<vmem>>, vector<1x8x2048xf32>
    %171 = vector.shape_cast %170 : vector<1x8x2048xf32> to vector<8x2048xf32>
    %172 = vector.shape_cast %169 : vector<8x2048xf32> to vector<1x8x2048xf32>
    tpu.vector_store %arg2[%c0_44, %c0_45, %c0_46], %172 {strides = array<i32>} : memref<2x8x2048xf32, #tpu.memory_space<vmem>>, vector<1x8x2048xf32>,
    %cst_47 = arith.constant 1.000000e-01 : f32
    %173 = vector.broadcast %cst_47 : f32 to vector<8x2048xf32>
    %174 = arith.mulf %173, %165 : vector<8x2048xf32>
    %175 = arith.addf %3, %174 : vector<8x2048xf32>
    %c1_48 = arith.constant 1 : index
    %c0_49 = arith.constant 0 : index
    %c0_50 = arith.constant 0 : index
    %176 = vector.load %arg2[%c1_48, %c0_49, %c0_50] : memref<2x8x2048xf32, #tpu.memory_space<vmem>>, vector<1x8x2048xf32>
    %177 = vector.shape_cast %176 : vector<1x8x2048xf32> to vector<8x2048xf32>
    %178 = vector.shape_cast %175 : vector<8x2048xf32> to vector<1x8x2048xf32>
    tpu.vector_store %arg2[%c1_48, %c0_49, %c0_50], %178 {strides = array<i32>} : memref<2x8x2048xf32, #tpu.memory_space<vmem>>, vector<1x8x2048xf32>,
    return
  }
  func.func @transform_0(%arg0: i32) -> (i32, i32, i32) {
    %c0_i32 = arith.constant 0 : i32
    %c0_i32_0 = arith.constant 0 : i32
    %c0_i32_1 = arith.constant 0 : i32
    return %c0_i32, %arg0, %c0_i32_0 : i32, i32, i32
  }
  func.func @transform_1(%arg0: i32) -> (i32, i32, i32) {
    %c0_i32 = arith.constant 0 : i32
    %c0_i32_0 = arith.constant 0 : i32
    %c0_i32_1 = arith.constant 0 : i32
    return %c0_i32, %arg0, %c0_i32_0 : i32, i32, i32
  }
}

</mosaic_0001>

<llo_original>
// kernel: tpu_custom_call.1
$region0: #{tpu_custom_call.1}
  #allocation0 [shape = 'u32[]', space=smem, size = 0x4, offset = 0x4, fixed_abs, tag = 'smem constant byte address 0x4 - core index']
  #allocation1 [shape = 'u32[144,128]{1,0:T(1,128)}', space=vmem, size = 0x12000, scoped, tag = 'internal scratch']
  #allocation2 [shape = 's32[1]{0}', space=sflag, size = 0x4, scoped, tag = 'scoped memory for tpu_custom_call.1']
  #allocation3 [shape = 'u8[512]{0}', space=smem, size = 0x200, scoped, tag = 'prefetched SMEM operand 0']
  #allocation4 [shape = 'u8[512]{0}', space=smem, size = 0x200, scoped, tag = 'prefetched SMEM operand 1']
  %s0 = inlined_call_operand.hbm [shape: s32[1,4], index: 0, kind: input, shape index: {}]
  %s1 = inlined_call_operand.vmem [shape: f32[1,4], index: 1, kind: input, shape index: {}]
  %s2 = inlined_call_operand.hbm [shape: f32[8,512], index: 2, kind: input, shape index: {}]
  %s3 = inlined_call_operand.hbm [shape: f32[8,512], index: 3, kind: output, shape index: {}]
  %s4 = sld [smem:[#allocation0]]
  $region18: #{tpu_custom_call.1} parent=0
    _
  %s6 = ssub.s32 1, %s4
  %s7 = scalar_select 0, %s6, %s4
  %9 = dma.hbm_to_smem %s0, 16, [#allocation3], [#allocation2]
  %s10 = sshll.u32 %s1, 4
  %s11 = int_to_ptr.vmem [resolvable:$true] %s10
  %13 = dma.vmem_to_smem %s11, 16, [#allocation4], [#allocation2]
  %14 = dma.done [#allocation2], 32
  %15 = sfence
  $region1: #{tpu_custom_call.1} parent=0
    #allocation5 [shape = 'u8[16384]{0}', space=vmem, size = 0x4000, scoped, tag = 'input window, operand 2, single buffered']
    #allocation6 [shape = 's32[1]{0}', space=sflag, size = 0x4, scoped, tag = 'scoped memory for tpu_custom_call.1']
    #allocation7 [shape = 's32[1]{0}', space=sflag, size = 0x4, scoped, tag = 'scoped memory for tpu_custom_call.1']
    #allocation8 [shape = 'u8[16384]{0}', space=vmem, size = 0x4000, scoped, tag = 'output window, operand 0, single buffered']
    %16 = vsyncpa [#allocation6], 0
    %17 = vsyncpa [#allocation7], 0
    // Predicated region
    $region2: #{tpu_custom_call.1} parent=1 // pred_check
      _
    $region3: #{tpu_custom_call.1} parent=1 // pred_check_branch
      %19 = sbr.rel (0) target = $region5
    $region4: #{tpu_custom_call.1} parent=1 // pred_region
      %s21 = ssub.s32 512, 512
      %22 = vsyncadd [#allocation6], %s21
      %s24 = sshll.u32 [#allocation5], 4
      %s25 = int_to_ptr.vmem [resolvable:$true] %s24
      %27 = dma.hbm_to_vmem [thread:$0]  %s2, 512, %s25, [#allocation6]
    $region5: #{tpu_custom_call.1} parent=1 // pred_fallthru
      _
    // Predicated region
    $region6: #{tpu_custom_call.1} parent=1 // pred_check
      _
    $region7: #{tpu_custom_call.1} parent=1 // pred_check_branch
      %29 = sbr.rel (0) target = $region9
    $region8: #{tpu_custom_call.1} parent=1 // pred_region
      %30 = dma.done [#allocation6], 512
    $region9: #{tpu_custom_call.1} parent=1 // pred_fallthru
      _
    %s31 = sld [smem:[#allocation3 + $0x1]]
    %v32 = vld [vmem:[#allocation5] sm:$0xff]
    %v33 = vld [vmem:[#allocation5 + $0x8] sm:$0xff]
    %v34 = vld [vmem:[#allocation5 + $0x10] sm:$0xff]
    %v35 = vld [vmem:[#allocation5 + $0x18] sm:$0xff]
    %s36 = sand.u32 %s31, 511
    %s37 = sand.u32 %s36, 127
    %s38 = sshrl.u32 %s36, 7
    %39 = vrot.lane.b32.xlu0 %v32, %s37
    %v40 = vpop.permute.xlu0 %39
    %41 = vrot.lane.b32.xlu0 %v33, %s37
    %v42 = vpop.permute.xlu0 %41
    %43 = vrot.lane.b32.xlu0 %v34, %s37
    %v44 = vpop.permute.xlu0 %43
    %45 = vrot.lane.b32.xlu0 %v35, %s37
    %v46 = vpop.permute.xlu0 %45
    %v47 = vstv %s37
    %v48 = vlaneseq
    %v49 = vand.u32 %v48, 127
    %vm50 = vcmp.lt.s32.totalorder %v49, %v47
    %v51 = vsel %vm50, %v44, %v46
    %v52 = vsel %vm50, %v42, %v44
    %v53 = vsel %vm50, %v40, %v42
    %v54 = vsel %vm50, %v46, %v40
    %s55 = sand.u32 %s38, 1
    %v56 = vstv %s55
    %vm57 = vcmp.ne.s32.totalorder %v56, 0
    %v58 = vsel %vm57, %v51, %v54
    %v59 = vsel %vm57, %v54, %v53
    %v60 = vsel %vm57, %v53, %v52
    %v61 = vsel %vm57, %v52, %v51
    %s62 = sand.u32 %s38, 2
    %v63 = vstv %s62
    %vm64 = vcmp.ne.s32.totalorder %v63, 0
    %v65 = vsel %vm64, %v60, %v58
    %v66 = vsel %vm64, %v61, %v59
    %v67 = vsel %vm64, %v58, %v60
    %v68 = vsel %vm64, %v59, %v61
    %s69 = sld [smem:[#allocation4 + $0x1]]
    %v70 = vstv %s69
    %v71 = vmul.f32 %v65, %v70
    %v72 = vmul.f32 %v66, %v70
    %v73 = vmul.f32 %v67, %v70
    %v74 = vmul.f32 %v68, %v70
    %75 = vst [vmem:[#allocation8] sm:$0xff] %v71
    %76 = vst [vmem:[#allocation8 + $0x8] sm:$0xff] %v72
    %77 = vst [vmem:[#allocation8 + $0x10] sm:$0xff] %v73
    %78 = vst [vmem:[#allocation8 + $0x18] sm:$0xff] %v74
    // Predicated region
    $region10: #{tpu_custom_call.1} parent=1 // pred_check
      _
    $region11: #{tpu_custom_call.1} parent=1 // pred_check_branch
      %80 = sbr.rel (0) target = $region13
    $region12: #{tpu_custom_call.1} parent=1 // pred_region
      %s82 = ssub.s32 512, 512
      %83 = vsyncadd [#allocation7], %s82
      %s85 = sshll.u32 [#allocation8], 4
      %s86 = int_to_ptr.vmem [resolvable:$true] %s85
      %88 = dma.vmem_to_hbm [thread:$0]  %s86, 512, %s3, [#allocation7]
    $region13: #{tpu_custom_call.1} parent=1 // pred_fallthru
      _
    // Predicated region
    $region14: #{tpu_custom_call.1} parent=1 // pred_check
      _
    $region15: #{tpu_custom_call.1} parent=1 // pred_check_branch
      %90 = sbr.rel (0) target = $region17
    $region16: #{tpu_custom_call.1} parent=1 // pred_region
      %91 = dma.done [#allocation7], 512
    $region17: #{tpu_custom_call.1} parent=1 // pred_fallthru
      _
    %92 = vsyncpa [#allocation6], 1
    %93 = vsyncpa [#allocation7], 1

// kernel: tpu_custom_call.1
$region0: #{tpu_custom_call.1}
  #allocation0 [shape = 'u32[]', space=smem, size = 0x4, offset = 0x4, fixed_abs, tag = 'smem constant byte address 0x4 - core index']
  #allocation1 [shape = 'u32[144,128]{1,0:T(1,128)}', space=vmem, size = 0x12000, scoped, tag = 'internal scratch']
  %s0 = inlined_call_operand.hbm [shape: f32[2,16,2048], index: 0, kind: input, shape index: {}]
  %s1 = inlined_call_operand.hbm [shape: f32[2,16,2048], index: 1, kind: output, shape index: {}]
  %s2 = sld [smem:[#allocation0]]
  $region41: #{tpu_custom_call.1} parent=0
    _
  %s4 = ssub.s32 1, %s2
  %s5 = scalar_select 0, %s4, %s2
  $region1: #{tpu_custom_call.1} parent=0
    #allocation2 [shape = 'u8[262144]{0}', space=vmem, size = 0x40000, scoped, tag = 'input window, operand 0']
    #allocation3 [shape = 's32[2]{0}', space=sflag, size = 0x8, scoped, tag = 'scoped memory for tpu_custom_call.1']
    #allocation4 [shape = 's32[2]{0}', space=sflag, size = 0x8, scoped, tag = 'scoped memory for tpu_custom_call.1']
    #allocation5 [shape = 'u8[262144]{0}', space=vmem, size = 0x40000, scoped, tag = 'output window, operand 0']
    %6 = vsyncpa [#allocation3], 0
    %s7 = scalar_lea.sflag [#allocation3], 1
    %8 = vsyncpa %s7, 0
    %9 = vsyncpa [#allocation4], 0
    %s10 = scalar_lea.sflag [#allocation4], 1
    %11 = vsyncpa %s10, 0
    loop: start=0, step=1, limit=4
    $region2: #{tpu_custom_call.1} parent=1 // loop_pre_header
      _
    $region3: #{tpu_custom_call.1} parent=1 // loop_header
      %s13 = sphi 0, %s17
      %p14 = scmp.ge.s32.totalorder %s13, 4
      %s23 = sphi 0, %s25
      %s26 = sphi 0, %s23
      %s27 = sphi 0, %s26
      %s43 = sphi 0, %s27
      %s49 = sphi 0, %s51
      %s52 = sphi 0, %s49
      %s53 = sphi 0, %s52
      %s69 = sphi 0, %s53
    $region4: #{tpu_custom_call.1} parent=1 // loop_header_branch
      %16 = sbr.rel (%p14) target = $region8
    $region5: #{tpu_custom_call.1} parent=1 // loop_body
      %s18 = ssub.s32 %s13, 1
      %s19 = ssub.s32 %s13, 2
      %s20 = sadd.s32 %s13, 1
      %s21 = ssub.s32 %s13, %s20
      %p22 = scmp.eq.s32.totalorder %s21, 0
      %s24 = sadd.s32 %s23, 1
      %s25 = scalar_select %p22, %s23, %s24
      %p28 = pneg %p22
      %p29 = scmp.eq.s32.totalorder %s13, 1
      %p30 = por %p28, %p29
      %p31 = scmp.ne.s32.totalorder %s23, %s26
      %p32 = scmp.eq.s32.totalorder %s13, 0
      %p33 = por %p31, %p32
      %p34 = scmp.ne.s32.totalorder %s23, %s26
      %p35 = scmp.eq.s32.totalorder %s18, 1
      %p36 = por %p34, %p35
      %p37 = scmp.ne.s32.totalorder %s26, %s27
      %p38 = scmp.eq.s32.totalorder %s18, 0
      %p39 = por %p37, %p38
      %p40 = scmp.ne.s32.totalorder %s26, %s27
      %p41 = scmp.eq.s32.totalorder %s19, 1
      %p42 = por %p40, %p41
      %p44 = scmp.ne.s32.totalorder %s27, %s43
      %p45 = scmp.eq.s32.totalorder %s19, 0
      %p46 = por %p44, %p45
      %s47 = ssub.s32 %s13, %s20
      %p48 = scmp.eq.s32.totalorder %s47, 0
      %s50 = sadd.s32 %s49, 1
      %s51 = scalar_select %p48, %s49, %s50
      %p54 = pneg %p48
      %p55 = scmp.eq.s32.totalorder %s13, 1
      %p56 = por %p54, %p55
      %p57 = scmp.ne.s32.totalorder %s49, %s52
      %p58 = scmp.eq.s32.totalorder %s13, 0
      %p59 = por %p57, %p58
      %p60 = scmp.ne.s32.totalorder %s49, %s52
      %p61 = scmp.eq.s32.totalorder %s18, 1
      %p62 = por %p60, %p61
      %p63 = scmp.ne.s32.totalorder %s52, %s53
      %p64 = scmp.eq.s32.totalorder %s18, 0
      %p65 = por %p63, %p64
      %p66 = scmp.ne.s32.totalorder %s52, %s53
      %p67 = scmp.eq.s32.totalorder %s19, 1
      %p68 = por %p66, %p67
      %p70 = scmp.ne.s32.totalorder %s53, %s69
      %p71 = scmp.eq.s32.totalorder %s19, 0
      %p72 = por %p70, %p71
      %p73 = scmp.le.s32.totalorder 1, %s13
      %p74 = scmp.lt.s32.totalorder %s13, 3
      %p75 = pnand %p73, %p74
      %p76 = pneg %p75
      // Predicated region
      $region9: #{tpu_custom_call.1} parent=5 // pred_check
        _
      $region10: #{tpu_custom_call.1} parent=5 // pred_check_branch
        %78 = sbr.rel (%p75) target = $region12
      $region11: #{tpu_custom_call.1} parent=5 // pred_region
        %s79 = ssub.s32 %s13, 1
      $region12: #{tpu_custom_call.1} parent=5 // pred_fallthru
        _
      %p80 = scmp.lt.s32.totalorder %s13, 2
      // Predicated region
      $region13: #{tpu_custom_call.1} parent=5 // pred_check
        %p81 = pneg %p80
      $region14: #{tpu_custom_call.1} parent=5 // pred_check_branch
        %83 = sbr.rel (%p81) target = $region16
      $region15: #{tpu_custom_call.1} parent=5 // pred_region
        // Predicated region
        $region17: #{tpu_custom_call.1} parent=15 // pred_check
          %p84 = pneg %p33
        $region18: #{tpu_custom_call.1} parent=15 // pred_check_branch
          %86 = sbr.rel (%p84) target = $region20
        $region19: #{tpu_custom_call.1} parent=15 // pred_region
          %s87 = sand.u32 %s23, 1
          %s88 = scalar_lea.sflag [#allocation3], %s87
          %s89 = sand.u32 %s23, 1
          %s90 = smul.addr %s89, 256
          %s91 = scalar_lea.vmem [#allocation2], %s90
          %s93 = ssub.s32 4096, 4096
          %94 = vsyncadd %s88, %s93
          %s95 = smul.addr %s13, 16
          %s96 = smul.addr %s95, 128
          %s97 = scalar_lea.hbm %s0, %s96
          %s98 = sshll.u32 %s91, 4
          %s99 = int_to_ptr.vmem [resolvable:$true] %s98
          %104 = dma.hbm_to_vmem [thread:$0]  %s97, 4096, %s99, %s88, 4096, 2048, 128
        $region20: #{tpu_custom_call.1} parent=15 // pred_fallthru
          _
      $region16: #{tpu_custom_call.1} parent=5 // pred_fallthru
        _
      %p105 = scmp.le.s32.totalorder 1, %s13
      %p106 = scmp.lt.s32.totalorder %s13, 3
      %p107 = pnand %p105, %p106
      %p108 = pneg %p107
      // Predicated region
      $region21: #{tpu_custom_call.1} parent=5 // pred_check
        _
      $region22: #{tpu_custom_call.1} parent=5 // pred_check_branch
        %110 = sbr.rel (%p107) target = $region24
      $region23: #{tpu_custom_call.1} parent=5 // pred_region
        %s111 = ssub.s32 %s13, 1
        %s112 = sand.u32 %s26, 1
        %s113 = scalar_lea.sflag [#allocation3], %s112
        %s114 = sand.u32 %s26, 1
        %s115 = smul.addr %s114, 256
        %s116 = scalar_lea.vmem [#allocation2], %s115
        // Predicated region
        $region25: #{tpu_custom_call.1} parent=23 // pred_check
          %p117 = pneg %p39
        $region26: #{tpu_custom_call.1} parent=23 // pred_check_branch
          %119 = sbr.rel (%p117) target = $region28
        $region27: #{tpu_custom_call.1} parent=23 // pred_region
          %120 = dma.done %s113, 4096
        $region28: #{tpu_custom_call.1} parent=23 // pred_fallthru
          _
        %s121 = sand.u32 %s26, 1
        %s122 = scalar_lea.sflag [#allocation3], %s121
        %s123 = sand.u32 %s26, 1
        %s124 = smul.addr %s123, 256
        %s125 = scalar_lea.vmem [#allocation2], %s124
        %p126 = pneg %p39
        %p127 = pneg %p36
        %p128 = pneg %p65
        %p129 = pneg %p62
        %s130 = sand.u32 %s52, 1
        %s131 = scalar_lea.sflag [#allocation4], %s130
        %s132 = sand.u32 %s52, 1
        %s133 = smul.addr %s132, 256
        %s134 = scalar_lea.vmem [#allocation5], %s133
        %v135 = vld [vmem:[%s116] sm:$0xff]
        %v136 = vld [vmem:[%s116 + $0x8] sm:$0xff]
        %v137 = vld [vmem:[%s116 + $0x10] sm:$0xff]
        %v138 = vld [vmem:[%s116 + $0x18] sm:$0xff]
        %v139 = vld [vmem:[%s116 + $0x20] sm:$0xff]
        %v140 = vld [vmem:[%s116 + $0x28] sm:$0xff]
        %v141 = vld [vmem:[%s116 + $0x30] sm:$0xff]
        %v142 = vld [vmem:[%s116 + $0x38] sm:$0xff]
        %v143 = vld [vmem:[%s116 + $0x40] sm:$0xff]
        %v144 = vld [vmem:[%s116 + $0x48] sm:$0xff]
        %v145 = vld [vmem:[%s116 + $0x50] sm:$0xff]
        %v146 = vld [vmem:[%s116 + $0x58] sm:$0xff]
        %v147 = vld [vmem:[%s116 + $0x60] sm:$0xff]
        %v148 = vld [vmem:[%s116 + $0x68] sm:$0xff]
        %v149 = vld [vmem:[%s116 + $0x70] sm:$0xff]
        %v150 = vld [vmem:[%s116 + $0x78] sm:$0xff]
        %s151 = scalar_lea.vmem %s116, 128 [#allocation2]
        %v152 = vld [vmem:[%s151] sm:$0xff]
        %v153 = vld [vmem:[%s151 + $0x8] sm:$0xff]
        %v154 = vld [vmem:[%s151 + $0x10] sm:$0xff]
        %v155 = vld [vmem:[%s151 + $0x18] sm:$0xff]
        %v156 = vld [vmem:[%s151 + $0x20] sm:$0xff]
        %v157 = vld [vmem:[%s151 + $0x28] sm:$0xff]
        %v158 = vld [vmem:[%s151 + $0x30] sm:$0xff]
        %v159 = vld [vmem:[%s151 + $0x38] sm:$0xff]
        %v160 = vld [vmem:[%s151 + $0x40] sm:$0xff]
        %v161 = vld [vmem:[%s151 + $0x48] sm:$0xff]
        %v162 = vld [vmem:[%s151 + $0x50] sm:$0xff]
        %v163 = vld [vmem:[%s151 + $0x58] sm:$0xff]
        %v164 = vld [vmem:[%s151 + $0x60] sm:$0xff]
        %v165 = vld [vmem:[%s151 + $0x68] sm:$0xff]
        %v166 = vld [vmem:[%s151 + $0x70] sm:$0xff]
        %v167 = vld [vmem:[%s151 + $0x78] sm:$0xff]
        %v168 = vmul.f32 %v135, 0.22738633
        %v169 = vmul.f32 %v136, 0.22738633
        %v170 = vmul.f32 %v137, 0.22738633
        %v171 = vmul.f32 %v138, 0.22738633
        %v172 = vmul.f32 %v139, 0.22738633
        %v173 = vmul.f32 %v140, 0.22738633
        %v174 = vmul.f32 %v141, 0.22738633
        %v175 = vmul.f32 %v142, 0.22738633
        %v176 = vmul.f32 %v143, 0.22738633
        %v177 = vmul.f32 %v144, 0.22738633
        %v178 = vmul.f32 %v145, 0.22738633
        %v179 = vmul.f32 %v146, 0.22738633
        %v180 = vmul.f32 %v147, 0.22738633
        %v181 = vmul.f32 %v148, 0.22738633
        %v182 = vadd.f32 %v168, 0.0
        %v183 = vadd.f32 %v169, 0.0
        %v184 = vadd.f32 %v170, 0.0
        %v185 = vadd.f32 %v171, 0.0
        %v186 = vadd.f32 %v172, 0.0
        %v187 = vadd.f32 %v173, 0.0
        %v188 = vadd.f32 %v174, 0.0
        %v189 = vadd.f32 %v175, 0.0
        %v190 = vadd.f32 %v176, 0.0
        %v191 = vadd.f32 %v177, 0.0
        %v192 = vadd.f32 %v178, 0.0
        %v193 = vadd.f32 %v179, 0.0
        %v194 = vadd.f32 %v180, 0.0
        %v195 = vadd.f32 %v181, 0.0
        %v196 = vmul.f32 %v135, 0.18506682
        %v197 = vmul.f32 %v136, 0.18506682
        %v198 = vmul.f32 %v137, 0.18506682
        %v199 = vmul.f32 %v138, 0.18506682
        %v200 = vmul.f32 %v139, 0.18506682
        %v201 = vmul.f32 %v140, 0.18506682
        %v202 = vmul.f32 %v141, 0.18506682
        %v203 = vmul.f32 %v142, 0.18506682
        %v204 = vmul.f32 %v143, 0.18506682
        %v205 = vmul.f32 %v144, 0.18506682
        %v206 = vmul.f32 %v145, 0.18506682
        %v207 = vmul.f32 %v146, 0.18506682
        %v208 = vadd.f32 %v196, 0.0
        %v209 = vadd.f32 %v197, 0.0
        %v210 = vadd.f32 %v198, 0.0
        %v211 = vadd.f32 %v199, 0.0
        %v212 = vadd.f32 %v200, 0.0
        %v213 = vadd.f32 %v201, 0.0
        %v214 = vadd.f32 %v202, 0.0
        %v215 = vadd.f32 %v203, 0.0
        %v216 = vadd.f32 %v204, 0.0
        %v217 = vadd.f32 %v205, 0.0
        %v218 = vadd.f32 %v206, 0.0
        %v219 = vadd.f32 %v207, 0.0
        %v220 = vmul.f32 %v135, 0.14927098
        %v221 = vmul.f32 %v136, 0.14927098
        %v222 = vmul.f32 %v137, 0.14927098
        %v223 = vmul.f32 %v138, 0.14927098
        %v224 = vmul.f32 %v139, 0.14927098
        %v225 = vmul.f32 %v140, 0.14927098
        %v226 = vmul.f32 %v141, 0.14927098
        %v227 = vmul.f32 %v142, 0.14927098
        %v228 = vmul.f32 %v143, 0.14927098
        %v229 = vmul.f32 %v144, 0.14927098
        %v230 = vadd.f32 %v220, 0.0
        %v231 = vadd.f32 %v221, 0.0
        %v232 = vadd.f32 %v222, 0.0
        %v233 = vadd.f32 %v223, 0.0
        %v234 = vadd.f32 %v224, 0.0
        %v235 = vadd.f32 %v225, 0.0
        %v236 = vadd.f32 %v226, 0.0
        %v237 = vadd.f32 %v227, 0.0
        %v238 = vadd.f32 %v228, 0.0
        %v239 = vadd.f32 %v229, 0.0
        %v240 = vmul.f32 %v135, 0.117939465
        %v241 = vmul.f32 %v136, 0.117939465
        %v242 = vmul.f32 %v137, 0.117939465
        %v243 = vmul.f32 %v138, 0.117939465
        %v244 = vmul.f32 %v139, 0.117939465
        %v245 = vmul.f32 %v140, 0.117939465
        %v246 = vmul.f32 %v141, 0.117939465
        %v247 = vadd.f32 %v240, 0.0
        %v248 = vadd.f32 %v241, 0.0
        %v249 = vadd.f32 %v242, 0.0
        %v250 = vadd.f32 %v243, 0.0
        %v251 = vadd.f32 %v244, 0.0
        %v252 = vadd.f32 %v245, 0.0
        %v253 = vadd.f32 %v246, 0.0
        %v254 = vmul.f32 %v135, 0.09571927
        %v255 = vmul.f32 %v136, 0.09571927
        %v256 = vmul.f32 %v137, 0.09571927
        %v257 = vmul.f32 %v138, 0.09571927
        %v258 = vmul.f32 %v139, 0.09571927
        %265 = vrot.lane.b32.xlu0 0.0, 47
        %v266 = vpop.permute.xlu0 %265
        %267 = vrot.lane.b32.xlu0 %v254, 47
        %v268 = vpop.permute.xlu0 %267
        %269 = vrot.lane.b32.xlu0 %v255, 47
        %v270 = vpop.permute.xlu0 %269
        %271 = vrot.lane.b32.xlu0 %v256, 47
        %v272 = vpop.permute.xlu0 %271
        %273 = vrot.lane.b32.xlu0 %v257, 47
        %v274 = vpop.permute.xlu0 %273
        %275 = vrot.lane.b32.xlu0 %v258, 47
        %v276 = vpop.permute.xlu0 %275
        %vm277 = vcmask 384000
        %v278 = vsel %vm277, %v266, %v268
        %v279 = vsel %vm277, %v268, %v270
        %v280 = vsel %vm277, %v270, %v272
        %v281 = vsel %vm277, %v272, %v274
        %v282 = vsel %vm277, %v274, %v276
        %v289 = vadd.f32 %v266, 0.0
        %v290 = vadd.f32 %v182, %v266
        %v291 = vadd.f32 %v183, %v266
        %v292 = vadd.f32 %v184, %v266
        %v293 = vadd.f32 %v185, %v266
        %v294 = vadd.f32 %v186, %v266
        %v295 = vadd.f32 %v187, %v266
        %v296 = vadd.f32 %v188, %v266
        %v297 = vadd.f32 %v189, %v266
        %v298 = vadd.f32 %v190, %v266
        %v299 = vadd.f32 %v191, %v278
        %v300 = vadd.f32 %v192, %v279
        %v301 = vadd.f32 %v193, %v280
        %v302 = vadd.f32 %v194, %v281
        %v303 = vadd.f32 %v195, %v282
        %v304 = vmul.f32 %v135, 0.07788772
        %v305 = vmul.f32 %v136, 0.07788772
        %v306 = vmul.f32 %v137, 0.07788772
        %310 = vrot.lane.b32.xlu0 0.0, 44
        %v311 = vpop.permute.xlu0 %310
        %312 = vrot.lane.b32.xlu0 %v304, 44
        %v313 = vpop.permute.xlu0 %312
        %314 = vrot.lane.b32.xlu0 %v305, 44
        %v315 = vpop.permute.xlu0 %314
        %316 = vrot.lane.b32.xlu0 %v306, 44
        %v317 = vpop.permute.xlu0 %316
        %vm318 = vcmask 359424
        %v319 = vsel %vm318, %v311, %v313
        %v320 = vsel %vm318, %v313, %v315
        %v321 = vsel %vm318, %v315, %v317
        %v326 = vadd.f32 %v311, 0.0
        %v327 = vadd.f32 %v208, %v311
        %v328 = vadd.f32 %v209, %v311
        %v329 = vadd.f32 %v210, %v311
        %v330 = vadd.f32 %v211, %v311
        %v331 = vadd.f32 %v212, %v311
        %v332 = vadd.f32 %v213, %v311
        %v333 = vadd.f32 %v214, %v311
        %v334 = vadd.f32 %v215, %v311
        %v335 = vadd.f32 %v216, %v311
        %v336 = vadd.f32 %v217, %v319
        %v337 = vadd.f32 %v218, %v320
        %v338 = vadd.f32 %v219, %v321
        %353 = vrot.lane.b32.xlu0 %v168, 44
        %v354 = vpop.permute.xlu0 %353
        %355 = vrot.lane.b32.xlu0 %v169, 44
        %v356 = vpop.permute.xlu0 %355
        %357 = vrot.lane.b32.xlu0 %v170, 44
        %v358 = vpop.permute.xlu0 %357
        %359 = vrot.lane.b32.xlu0 %v171, 44
        %v360 = vpop.permute.xlu0 %359
        %361 = vrot.lane.b32.xlu0 %v172, 44
        %v362 = vpop.permute.xlu0 %361
        %363 = vrot.lane.b32.xlu0 %v173, 44
        %v364 = vpop.permute.xlu0 %363
        %365 = vrot.lane.b32.xlu0 %v174, 44
        %v366 = vpop.permute.xlu0 %365
        %367 = vrot.lane.b32.xlu0 %v175, 44
        %v368 = vpop.permute.xlu0 %367
        %369 = vrot.lane.b32.xlu0 %v176, 44
        %v370 = vpop.permute.xlu0 %369
        %371 = vrot.lane.b32.xlu0 %v177, 44
        %v372 = vpop.permute.xlu0 %371
        %373 = vrot.lane.b32.xlu0 %v178, 44
        %v374 = vpop.permute.xlu0 %373
        %375 = vrot.lane.b32.xlu0 %v179, 44
        %v376 = vpop.permute.xlu0 %375
        %377 = vrot.lane.b32.xlu0 %v180, 44
        %v378 = vpop.permute.xlu0 %377
        %379 = vrot.lane.b32.xlu0 %v181, 44
        %v380 = vpop.permute.xlu0 %379
        %v381 = vsel %vm318, %v311, %v354
        %v382 = vsel %vm318, %v354, %v356
        %v383 = vsel %vm318, %v356, %v358
        %v384 = vsel %vm318, %v358, %v360
        %v385 = vsel %vm318, %v360, %v362
        %v386 = vsel %vm318, %v362, %v364
        %v387 = vsel %vm318, %v364, %v366
        %v388 = vsel %vm318, %v366, %v368
        %v389 = vsel %vm318, %v368, %v370
        %v390 = vsel %vm318, %v370, %v372
        %v391 = vsel %vm318, %v372, %v374
        %v392 = vsel %vm318, %v374, %v376
        %v393 = vsel %vm318, %v376, %v378
        %v394 = vsel %vm318, %v378, %v380
        %v410 = vadd.f32 %v381, 0.0
        %v411 = vadd.f32 %v382, 0.0
        %v412 = vadd.f32 %v383, 0.0
        %v413 = vadd.f32 %v384, 0.0
        %v414 = vadd.f32 %v385, 0.0
        %v415 = vadd.f32 %v230, %v386
        %v416 = vadd.f32 %v231, %v387
        %v417 = vadd.f32 %v232, %v388
        %v418 = vadd.f32 %v233, %v389
        %v419 = vadd.f32 %v234, %v390
        %v420 = vadd.f32 %v235, %v391
        %v421 = vadd.f32 %v236, %v392
        %v422 = vadd.f32 %v237, %v393
        %v423 = vadd.f32 %v238, %v394
        %v424 = vadd.f32 %v239, %v380
        %v425 = vmul.f32 %v135, 0.17959394
        %v426 = vmul.f32 %v136, 0.17959394
        %v427 = vmul.f32 %v137, 0.17959394
        %v428 = vmul.f32 %v138, 0.17959394
        %v429 = vmul.f32 %v139, 0.17959394
        %v430 = vmul.f32 %v140, 0.17959394
        %v431 = vmul.f32 %v141, 0.17959394
        %v432 = vmul.f32 %v142, 0.17959394
        %v433 = vmul.f32 %v143, 0.17959394
        %v434 = vmul.f32 %v144, 0.17959394
        %v435 = vmul.f32 %v145, 0.17959394
        %v436 = vmul.f32 %v146, 0.17959394
        %449 = vrot.lane.b32.xlu0 0.0, 41
        %v450 = vpop.permute.xlu0 %449
        %451 = vrot.lane.b32.xlu0 %v425, 41
        %v452 = vpop.permute.xlu0 %451
        %453 = vrot.lane.b32.xlu0 %v426, 41
        %v454 = vpop.permute.xlu0 %453
        %455 = vrot.lane.b32.xlu0 %v427, 41
        %v456 = vpop.permute.xlu0 %455
        %457 = vrot.lane.b32.xlu0 %v428, 41
        %v458 = vpop.permute.xlu0 %457
        %459 = vrot.lane.b32.xlu0 %v429, 41
        %v460 = vpop.permute.xlu0 %459
        %461 = vrot.lane.b32.xlu0 %v430, 41
        %v462 = vpop.permute.xlu0 %461
        %463 = vrot.lane.b32.xlu0 %v431, 41
        %v464 = vpop.permute.xlu0 %463
        %465 = vrot.lane.b32.xlu0 %v432, 41
        %v466 = vpop.permute.xlu0 %465
        %467 = vrot.lane.b32.xlu0 %v433, 41
        %v468 = vpop.permute.xlu0 %467
        %469 = vrot.lane.b32.xlu0 %v434, 41
        %v470 = vpop.permute.xlu0 %469
        %471 = vrot.lane.b32.xlu0 %v435, 41
        %v472 = vpop.permute.xlu0 %471
        %473 = vrot.lane.b32.xlu0 %v436, 41
        %v474 = vpop.permute.xlu0 %473
        %vm475 = vcmask 334848
        %v476 = vsel %vm475, %v450, %v452
        %v477 = vsel %vm475, %v452, %v454
        %v478 = vsel %vm475, %v454, %v456
        %v479 = vsel %vm475, %v456, %v458
        %v480 = vsel %vm475, %v458, %v460
        %v481 = vsel %vm475, %v460, %v462
        %v482 = vsel %vm475, %v462, %v464
        %v483 = vsel %vm475, %v464, %v466
        %v484 = vsel %vm475, %v466, %v468
        %v485 = vsel %vm475, %v468, %v470
        %v486 = vsel %vm475, %v470, %v472
        %v487 = vsel %vm475, %v472, %v474
        %v501 = vadd.f32 %v450, 0.0
        %v502 = vadd.f32 %v476, 0.0
        %v503 = vadd.f32 %v477, 0.0
        %v504 = vadd.f32 %v478, 0.0
        %v505 = vadd.f32 %v479, 0.0
        %v506 = vadd.f32 %v480, 0.0
        %v507 = vadd.f32 %v247, %v481
        %v508 = vadd.f32 %v248, %v482
        %v509 = vadd.f32 %v249, %v483
        %v510 = vadd.f32 %v250, %v484
        %v511 = vadd.f32 %v251, %v485
        %v512 = vadd.f32 %v252, %v486
        %v513 = vadd.f32 %v253, %v487
        %v514 = vmul.f32 %v135, 0.14125791
        %v515 = vmul.f32 %v136, 0.14125791
        %v516 = vmul.f32 %v137, 0.14125791
        %v517 = vmul.f32 %v138, 0.14125791
        %v518 = vmul.f32 %v139, 0.14125791
        %v519 = vmul.f32 %v140, 0.14125791
        %v520 = vmul.f32 %v141, 0.14125791
        %v521 = vmul.f32 %v142, 0.14125791
        %v522 = vmul.f32 %v143, 0.14125791
        %v523 = vmul.f32 %v144, 0.14125791
        %534 = vrot.lane.b32.xlu0 0.0, 77
        %v535 = vpop.permute.xlu0 %534
        %536 = vrot.lane.b32.xlu0 %v514, 77
        %v537 = vpop.permute.xlu0 %536
        %538 = vrot.lane.b32.xlu0 %v515, 77
        %v539 = vpop.permute.xlu0 %538
        %540 = vrot.lane.b32.xlu0 %v516, 77
        %v541 = vpop.permute.xlu0 %540
        %542 = vrot.lane.b32.xlu0 %v517, 77
        %v543 = vpop.permute.xlu0 %542
        %544 = vrot.lane.b32.xlu0 %v518, 77
        %v545 = vpop.permute.xlu0 %544
        %546 = vrot.lane.b32.xlu0 %v519, 77
        %v547 = vpop.permute.xlu0 %546
        %548 = vrot.lane.b32.xlu0 %v520, 77
        %v549 = vpop.permute.xlu0 %548
        %550 = vrot.lane.b32.xlu0 %v521, 77
        %v551 = vpop.permute.xlu0 %550
        %552 = vrot.lane.b32.xlu0 %v522, 77
        %v553 = vpop.permute.xlu0 %552
        %554 = vrot.lane.b32.xlu0 %v523, 77
        %v555 = vpop.permute.xlu0 %554
        %vm556 = vcmask 629760
        %v557 = vsel %vm556, %v535, %v537
        %v558 = vsel %vm556, %v537, %v539
        %v559 = vsel %vm556, %v539, %v541
        %v560 = vsel %vm556, %v541, %v543
        %v561 = vsel %vm556, %v543, %v545
        %v562 = vsel %vm556, %v545, %v547
        %v563 = vsel %vm556, %v547, %v549
        %v564 = vsel %vm556, %v549, %v551
        %v565 = vsel %vm556, %v551, %v553
        %v566 = vsel %vm556, %v553, %v555
        %v578 = vadd.f32 %v289, %v535
        %v579 = vadd.f32 %v290, %v535
        %v580 = vadd.f32 %v291, %v535
        %v581 = vadd.f32 %v292, %v535
        %v582 = vadd.f32 %v293, %v535
        %v583 = vadd.f32 %v294, %v557
        %v584 = vadd.f32 %v295, %v558
        %v585 = vadd.f32 %v296, %v559
        %v586 = vadd.f32 %v297, %v560
        %v587 = vadd.f32 %v298, %v561
        %v588 = vadd.f32 %v299, %v562
        %v589 = vadd.f32 %v300, %v563
        %v590 = vadd.f32 %v301, %v564
        %v591 = vadd.f32 %v302, %v565
        %v592 = vadd.f32 %v303, %v566
        %v593 = vmul.f32 %v135, 0.11493091
        %v594 = vmul.f32 %v136, 0.11493091
        %v595 = vmul.f32 %v137, 0.11493091
        %v596 = vmul.f32 %v138, 0.11493091
        %v597 = vmul.f32 %v139, 0.11493091
        %v598 = vmul.f32 %v140, 0.11493091
        %v599 = vmul.f32 %v141, 0.11493091
        %607 = vrot.lane.b32.xlu0 0.0, 79
        %v608 = vpop.permute.xlu0 %607
        %609 = vrot.lane.b32.xlu0 %v593, 79
        %v610 = vpop.permute.xlu0 %609
        %611 = vrot.lane.b32.xlu0 %v594, 79
        %v612 = vpop.permute.xlu0 %611
        %613 = vrot.lane.b32.xlu0 %v595, 79
        %v614 = vpop.permute.xlu0 %613
        %615 = vrot.lane.b32.xlu0 %v596, 79
        %v616 = vpop.permute.xlu0 %615
        %617 = vrot.lane.b32.xlu0 %v597, 79
        %v618 = vpop.permute.xlu0 %617
        %619 = vrot.lane.b32.xlu0 %v598, 79
        %v620 = vpop.permute.xlu0 %619
        %621 = vrot.lane.b32.xlu0 %v599, 79
        %v622 = vpop.permute.xlu0 %621
        %vm623 = vcmask 646144
        %v624 = vsel %vm623, %v608, %v610
        %v625 = vsel %vm623, %v610, %v612
        %v626 = vsel %vm623, %v612, %v614
        %v627 = vsel %vm623, %v614, %v616
        %v628 = vsel %vm623, %v616, %v618
        %v629 = vsel %vm623, %v618, %v620
        %v630 = vsel %vm623, %v620, %v622
        %v640 = vadd.f32 %v326, %v608
        %v641 = vadd.f32 %v327, %v608
        %v642 = vadd.f32 %v328, %v608
        %v643 = vadd.f32 %v329, %v608
        %v644 = vadd.f32 %v330, %v608
        %v645 = vadd.f32 %v331, %v624
        %v646 = vadd.f32 %v332, %v625
        %v647 = vadd.f32 %v333, %v626
        %v648 = vadd.f32 %v334, %v627
        %v649 = vadd.f32 %v335, %v628
        %v650 = vadd.f32 %v336, %v629
        %v651 = vadd.f32 %v337, %v630
        %v652 = vadd.f32 %v338, %v622
        %v653 = vmul.f32 %v135, 0.092513174
        %v654 = vmul.f32 %v136, 0.092513174
        %v655 = vmul.f32 %v137, 0.092513174
        %v656 = vmul.f32 %v138, 0.092513174
        %v657 = vmul.f32 %v139, 0.092513174
        %663 = vrot.lane.b32.xlu0 0.0, 48
        %v664 = vpop.permute.xlu0 %663
        %665 = vrot.lane.b32.xlu0 %v653, 48
        %v666 = vpop.permute.xlu0 %665
        %667 = vrot.lane.b32.xlu0 %v654, 48
        %v668 = vpop.permute.xlu0 %667
        %669 = vrot.lane.b32.xlu0 %v655, 48
        %v670 = vpop.permute.xlu0 %669
        %671 = vrot.lane.b32.xlu0 %v656, 48
        %v672 = vpop.permute.xlu0 %671
        %673 = vrot.lane.b32.xlu0 %v657, 48
        %v674 = vpop.permute.xlu0 %673
        %vm675 = vcmask 392192
        %v676 = vsel %vm675, %v664, %v666
        %v677 = vsel %vm675, %v666, %v668
        %v678 = vsel %vm675, %v668, %v670
        %v679 = vsel %vm675, %v670, %v672
        %v680 = vsel %vm675, %v672, %v674
        %v688 = vadd.f32 %v326, %v664
        %v689 = vadd.f32 %v410, %v664
        %v690 = vadd.f32 %v411, %v664
        %v691 = vadd.f32 %v412, %v664
        %v692 = vadd.f32 %v413, %v664
        %v693 = vadd.f32 %v414, %v664
        %v694 = vadd.f32 %v415, %v664
        %v695 = vadd.f32 %v416, %v664
        %v696 = vadd.f32 %v417, %v664
        %v697 = vadd.f32 %v418, %v664
        %v698 = vadd.f32 %v419, %v676
        %v699 = vadd.f32 %v420, %v677
        %v700 = vadd.f32 %v421, %v678
        %v701 = vadd.f32 %v422, %v679
        %v702 = vadd.f32 %v423, %v680
        %v703 = vadd.f32 %v424, %v674
        %v704 = vmul.f32 %v135, 0.07221472
        %v705 = vmul.f32 %v136, 0.07221472
        %v706 = vmul.f32 %v137, 0.07221472
        %710 = vrot.lane.b32.xlu0 %v704, 47
        %v711 = vpop.permute.xlu0 %710
        %712 = vrot.lane.b32.xlu0 %v705, 47
        %v713 = vpop.permute.xlu0 %712
        %714 = vrot.lane.b32.xlu0 %v706, 47
        %v715 = vpop.permute.xlu0 %714
        %v716 = vsel %vm277, %v266, %v711
        %v717 = vsel %vm277, %v711, %v713
        %v718 = vsel %vm277, %v713, %v715
        %v722 = vadd.f32 %v501, %v266
        %v723 = vadd.f32 %v502, %v266
        %v724 = vadd.f32 %v503, %v266
        %v725 = vadd.f32 %v504, %v266
        %v726 = vadd.f32 %v505, %v266
        %v727 = vadd.f32 %v506, %v266
        %v728 = vadd.f32 %v507, %v266
        %v729 = vadd.f32 %v508, %v266
        %v730 = vadd.f32 %v509, %v266
        %v731 = vadd.f32 %v510, %v266
        %v732 = vadd.f32 %v511, %v716
        %v733 = vadd.f32 %v512, %v717
        %v734 = vadd.f32 %v513, %v718
        %735 = vrot.lane.b32.xlu0 0.0, 91
        %v736 = vpop.permute.xlu0 %735
        %737 = vrot.lane.b32.xlu0 %v168, 91
        %v738 = vpop.permute.xlu0 %737
        %739 = vrot.lane.b32.xlu0 %v169, 91
        %v740 = vpop.permute.xlu0 %739
        %741 = vrot.lane.b32.xlu0 %v170, 91
        %v742 = vpop.permute.xlu0 %741
        %743 = vrot.lane.b32.xlu0 %v171, 91
        %v744 = vpop.permute.xlu0 %743
        %745 = vrot.lane.b32.xlu0 %v172, 91
        %v746 = vpop.permute.xlu0 %745
        %747 = vrot.lane.b32.xlu0 %v173, 91
        %v748 = vpop.permute.xlu0 %747
        %749 = vrot.lane.b32.xlu0 %v174, 91
        %v750 = vpop.permute.xlu0 %749
        %751 = vrot.lane.b32.xlu0 %v175, 91
        %v752 = vpop.permute.xlu0 %751
        %753 = vrot.lane.b32.xlu0 %v176, 91
        %v754 = vpop.permute.xlu0 %753
        %755 = vrot.lane.b32.xlu0 %v177, 91
        %v756 = vpop.permute.xlu0 %755
        %757 = vrot.lane.b32.xlu0 %v178, 91
        %v758 = vpop.permute.xlu0 %757
        %759 = vrot.lane.b32.xlu0 %v179, 91
        %v760 = vpop.permute.xlu0 %759
        %761 = vrot.lane.b32.xlu0 %v180, 91
        %v762 = vpop.permute.xlu0 %761
        %763 = vrot.lane.b32.xlu0 %v181, 91
        %v764 = vpop.permute.xlu0 %763
        %vm765 = vcmask 744448
        %v766 = vsel %vm765, %v736, %v738
        %v767 = vsel %vm765, %v738, %v740
        %v768 = vsel %vm765, %v740, %v742
        %v769 = vsel %vm765, %v742, %v744
        %v770 = vsel %vm765, %v744, %v746
        %v771 = vsel %vm765, %v746, %v748
        %v772 = vsel %vm765, %v748, %v750
        %v773 = vsel %vm765, %v750, %v752
        %v774 = vsel %vm765, %v752, %v754
        %v775 = vsel %vm765, %v754, %v756
        %v776 = vsel %vm765, %v756, %v758
        %v777 = vsel %vm765, %v758, %v760
        %v778 = vsel %vm765, %v760, %v762
        %v779 = vsel %vm765, %v762, %v764
        %v796 = vadd.f32 %v578, %v736
        %v797 = vadd.f32 %v578, %v766
        %v798 = vadd.f32 %v579, %v767
        %v799 = vadd.f32 %v580, %v768
        %v800 = vadd.f32 %v581, %v769
        %v801 = vadd.f32 %v582, %v770
        %v802 = vadd.f32 %v583, %v771
        %v803 = vadd.f32 %v584, %v772
        %v804 = vadd.f32 %v585, %v773
        %v805 = vadd.f32 %v586, %v774
        %v806 = vadd.f32 %v587, %v775
        %v807 = vadd.f32 %v588, %v776
        %v808 = vadd.f32 %v589, %v777
        %v809 = vadd.f32 %v590, %v778
        %v810 = vadd.f32 %v591, %v779
        %v811 = vadd.f32 %v592, %v764
        %v812 = vmul.f32 %v135, 0.18256438
        %v813 = vmul.f32 %v136, 0.18256438
        %v814 = vmul.f32 %v137, 0.18256438
        %v815 = vmul.f32 %v138, 0.18256438
        %v816 = vmul.f32 %v139, 0.18256438
        %v817 = vmul.f32 %v140, 0.18256438
        %v818 = vmul.f32 %v141, 0.18256438
        %v819 = vmul.f32 %v142, 0.18256438
        %v820 = vmul.f32 %v143, 0.18256438
        %v821 = vmul.f32 %v144, 0.18256438
        %v822 = vmul.f32 %v145, 0.18256438
        %v823 = vmul.f32 %v146, 0.18256438
        %836 = vrot.lane.b32.xlu0 0.0, 76
        %v837 = vpop.permute.xlu0 %836
        %838 = vrot.lane.b32.xlu0 %v812, 76
        %v839 = vpop.permute.xlu0 %838
        %840 = vrot.lane.b32.xlu0 %v813, 76
        %v841 = vpop.permute.xlu0 %840
        %842 = vrot.lane.b32.xlu0 %v814, 76
        %v843 = vpop.permute.xlu0 %842
        %844 = vrot.lane.b32.xlu0 %v815, 76
        %v845 = vpop.permute.xlu0 %844
        %846 = vrot.lane.b32.xlu0 %v816, 76
        %v847 = vpop.permute.xlu0 %846
        %848 = vrot.lane.b32.xlu0 %v817, 76
        %v849 = vpop.permute.xlu0 %848
        %850 = vrot.lane.b32.xlu0 %v818, 76
        %v851 = vpop.permute.xlu0 %850
        %852 = vrot.lane.b32.xlu0 %v819, 76
        %v853 = vpop.permute.xlu0 %852
        %854 = vrot.lane.b32.xlu0 %v820, 76
        %v855 = vpop.permute.xlu0 %854
        %856 = vrot.lane.b32.xlu0 %v821, 76
        %v857 = vpop.permute.xlu0 %856
        %858 = vrot.lane.b32.xlu0 %v822, 76
        %v859 = vpop.permute.xlu0 %858
        %860 = vrot.lane.b32.xlu0 %v823, 76
        %v861 = vpop.permute.xlu0 %860
        %vm862 = vcmask 621568
        %v863 = vsel %vm862, %v837, %v839
        %v864 = vsel %vm862, %v839, %v841
        %v865 = vsel %vm862, %v841, %v843
        %v866 = vsel %vm862, %v843, %v845
        %v867 = vsel %vm862, %v845, %v847
        %v868 = vsel %vm862, %v847, %v849
        %v869 = vsel %vm862, %v849, %v851
        %v870 = vsel %vm862, %v851, %v853
        %v871 = vsel %vm862, %v853, %v855
        %v872 = vsel %vm862, %v855, %v857
        %v873 = vsel %vm862, %v857, %v859
        %v874 = vsel %vm862, %v859, %v861
        %v889 = vadd.f32 %v640, %v837
        %v890 = vadd.f32 %v640, %v863
        %v891 = vadd.f32 %v641, %v864
        %v892 = vadd.f32 %v642, %v865
        %v893 = vadd.f32 %v643, %v866
        %v894 = vadd.f32 %v644, %v867
        %v895 = vadd.f32 %v645, %v868
        %v896 = vadd.f32 %v646, %v869
        %v897 = vadd.f32 %v647, %v870
        %v898 = vadd.f32 %v648, %v871
        %v899 = vadd.f32 %v649, %v872
        %v900 = vadd.f32 %v650, %v873
        %v901 = vadd.f32 %v651, %v874
        %v902 = vadd.f32 %v652, %v861
        %v903 = vmul.f32 %v135, 0.14259726
        %v904 = vmul.f32 %v136, 0.14259726
        %v905 = vmul.f32 %v137, 0.14259726
        %v906 = vmul.f32 %v138, 0.14259726
        %v907 = vmul.f32 %v139, 0.14259726
        %v908 = vmul.f32 %v140, 0.14259726
        %v909 = vmul.f32 %v141, 0.14259726
        %v910 = vmul.f32 %v142, 0.14259726
        %v911 = vmul.f32 %v143, 0.14259726
        %v912 = vmul.f32 %v144, 0.14259726
        %923 = vrot.lane.b32.xlu0 0.0, 84
        %v924 = vpop.permute.xlu0 %923
        %925 = vrot.lane.b32.xlu0 %v903, 84
        %v926 = vpop.permute.xlu0 %925
        %927 = vrot.lane.b32.xlu0 %v904, 84
        %v928 = vpop.permute.xlu0 %927
        %929 = vrot.lane.b32.xlu0 %v905, 84
        %v930 = vpop.permute.xlu0 %929
        %931 = vrot.lane.b32.xlu0 %v906, 84
        %v932 = vpop.permute.xlu0 %931
        %933 = vrot.lane.b32.xlu0 %v907, 84
        %v934 = vpop.permute.xlu0 %933
        %935 = vrot.lane.b32.xlu0 %v908, 84
        %v936 = vpop.permute.xlu0 %935
        %937 = vrot.lane.b32.xlu0 %v909, 84
        %v938 = vpop.permute.xlu0 %937
        %939 = vrot.lane.b32.xlu0 %v910, 84
        %v940 = vpop.permute.xlu0 %939
        %941 = vrot.lane.b32.xlu0 %v911, 84
        %v942 = vpop.permute.xlu0 %941
        %943 = vrot.lane.b32.xlu0 %v912, 84
        %v944 = vpop.permute.xlu0 %943
        %vm945 = vcmask 687104
        %v946 = vsel %vm945, %v924, %v926
        %v947 = vsel %vm945, %v926, %v928
        %v948 = vsel %vm945, %v928, %v930
        %v949 = vsel %vm945, %v930, %v932
        %v950 = vsel %vm945, %v932, %v934
        %v951 = vsel %vm945, %v934, %v936
        %v952 = vsel %vm945, %v936, %v938
        %v953 = vsel %vm945, %v938, %v940
        %v954 = vsel %vm945, %v940, %v942
        %v955 = vsel %vm945, %v942, %v944
        %v968 = vadd.f32 %v688, %v924
        %v969 = vadd.f32 %v689, %v924
        %v970 = vadd.f32 %v690, %v924
        %v971 = vadd.f32 %v691, %v924
        %v972 = vadd.f32 %v692, %v924
        %v973 = vadd.f32 %v693, %v946
        %v974 = vadd.f32 %v694, %v947
        %v975 = vadd.f32 %v695, %v948
        %v976 = vadd.f32 %v696, %v949
        %v977 = vadd.f32 %v697, %v950
        %v978 = vadd.f32 %v698, %v951
        %v979 = vadd.f32 %v699, %v952
        %v980 = vadd.f32 %v700, %v953
        %v981 = vadd.f32 %v701, %v954
        %v982 = vadd.f32 %v702, %v955
        %v983 = vadd.f32 %v703, %v944
        %v984 = vmul.f32 %v135, 0.11187474
        %v985 = vmul.f32 %v136, 0.11187474
        %v986 = vmul.f32 %v137, 0.11187474
        %v987 = vmul.f32 %v138, 0.11187474
        %v988 = vmul.f32 %v139, 0.11187474
        %v989 = vmul.f32 %v140, 0.11187474
        %v990 = vmul.f32 %v141, 0.11187474
        %v991 = vmul.f32 %v142, 0.11187474
        %1000 = vrot.lane.b32.xlu0 0.0, 50
        %v1001 = vpop.permute.xlu0 %1000
        %1002 = vrot.lane.b32.xlu0 %v984, 50
        %v1003 = vpop.permute.xlu0 %1002
        %1004 = vrot.lane.b32.xlu0 %v985, 50
        %v1005 = vpop.permute.xlu0 %1004
        %1006 = vrot.lane.b32.xlu0 %v986, 50
        %v1007 = vpop.permute.xlu0 %1006
        %1008 = vrot.lane.b32.xlu0 %v987, 50
        %v1009 = vpop.permute.xlu0 %1008
        %1010 = vrot.lane.b32.xlu0 %v988, 50
        %v1011 = vpop.permute.xlu0 %1010
        %1012 = vrot.lane.b32.xlu0 %v989, 50
        %v1013 = vpop.permute.xlu0 %1012
        %1014 = vrot.lane.b32.xlu0 %v990, 50
        %v1015 = vpop.permute.xlu0 %1014
        %1016 = vrot.lane.b32.xlu0 %v991, 50
        %v1017 = vpop.permute.xlu0 %1016
        %vm1018 = vcmask 408576
        %v1019 = vsel %vm1018, %v1001, %v1003
        %v1020 = vsel %vm1018, %v1003, %v1005
        %v1021 = vsel %vm1018, %v1005, %v1007
        %v1022 = vsel %vm1018, %v1007, %v1009
        %v1023 = vsel %vm1018, %v1009, %v1011
        %v1024 = vsel %vm1018, %v1011, %v1013
        %v1025 = vsel %vm1018, %v1013, %v1015
        %v1026 = vsel %vm1018, %v1015, %v1017
        %v1036 = vadd.f32 %v722, %v1001
        %v1037 = vadd.f32 %v723, %v1001
        %v1038 = vadd.f32 %v724, %v1001
        %v1039 = vadd.f32 %v725, %v1001
        %v1040 = vadd.f32 %v726, %v1001
        %v1041 = vadd.f32 %v727, %v1019
        %v1042 = vadd.f32 %v728, %v1020
        %v1043 = vadd.f32 %v729, %v1021
        %v1044 = vadd.f32 %v730, %v1022
        %v1045 = vadd.f32 %v731, %v1023
        %v1046 = vadd.f32 %v732, %v1024
        %v1047 = vadd.f32 %v733, %v1025
        %v1048 = vadd.f32 %v734, %v1026
        %v1049 = vmul.f32 %v135, 0.090917125
        %v1050 = vmul.f32 %v136, 0.090917125
        %v1051 = vmul.f32 %v137, 0.090917125
        %v1052 = vmul.f32 %v138, 0.090917125
        %v1053 = vmul.f32 %v139, 0.090917125
        %1059 = vrot.lane.b32.xlu0 0.0, 124
        %v1060 = vpop.permute.xlu0 %1059
        %1061 = vrot.lane.b32.xlu0 %v1049, 124
        %v1062 = vpop.permute.xlu0 %1061
        %1063 = vrot.lane.b32.xlu0 %v1050, 124
        %v1064 = vpop.permute.xlu0 %1063
        %1065 = vrot.lane.b32.xlu0 %v1051, 124
        %v1066 = vpop.permute.xlu0 %1065
        %1067 = vrot.lane.b32.xlu0 %v1052, 124
        %v1068 = vpop.permute.xlu0 %1067
        %1069 = vrot.lane.b32.xlu0 %v1053, 124
        %v1070 = vpop.permute.xlu0 %1069
        %vm1071 = vcmask 1014784
        %v1072 = vsel %vm1071, %v1060, %v1062
        %v1073 = vsel %vm1071, %v1062, %v1064
        %v1074 = vsel %vm1071, %v1064, %v1066
        %v1075 = vsel %vm1071, %v1066, %v1068
        %v1076 = vsel %vm1071, %v1068, %v1070
        %v1084 = vadd.f32 %v796, %v1060
        %v1085 = vadd.f32 %v797, %v1060
        %v1086 = vadd.f32 %v798, %v1060
        %v1087 = vadd.f32 %v799, %v1060
        %v1088 = vadd.f32 %v800, %v1060
        %v1089 = vadd.f32 %v801, %v1060
        %v1090 = vadd.f32 %v802, %v1060
        %v1091 = vadd.f32 %v803, %v1060
        %v1092 = vadd.f32 %v804, %v1060
        %v1093 = vadd.f32 %v805, %v1060
        %v1094 = vadd.f32 %v806, %v1072
        %v1095 = vadd.f32 %v807, %v1073
        %v1096 = vadd.f32 %v808, %v1074
        %v1097 = vadd.f32 %v809, %v1075
        %v1098 = vadd.f32 %v810, %v1076
        %v1099 = vadd.f32 %v811, %v1070
        %v1100 = vmul.f32 %v135, 0.07095582
        %v1101 = vmul.f32 %v136, 0.07095582
        %v1102 = vmul.f32 %v137, 0.07095582
        %1106 = vrot.lane.b32.xlu0 0.0, 113
        %v1107 = vpop.permute.xlu0 %1106
        %1108 = vrot.lane.b32.xlu0 %v1100, 113
        %v1109 = vpop.permute.xlu0 %1108
        %1110 = vrot.lane.b32.xlu0 %v1101, 113
        %v1111 = vpop.permute.xlu0 %1110
        %1112 = vrot.lane.b32.xlu0 %v1102, 113
        %v1113 = vpop.permute.xlu0 %1112
        %vm1114 = vcmask 924672
        %v1115 = vsel %vm1114, %v1107, %v1109
        %v1116 = vsel %vm1114, %v1109, %v1111
        %v1117 = vsel %vm1114, %v1111, %v1113
        %v1123 = vadd.f32 %v889, %v1107
        %v1124 = vadd.f32 %v890, %v1107
        %v1125 = vadd.f32 %v891, %v1107
        %v1126 = vadd.f32 %v892, %v1107
        %v1127 = vadd.f32 %v893, %v1107
        %v1128 = vadd.f32 %v894, %v1107
        %v1129 = vadd.f32 %v895, %v1107
        %v1130 = vadd.f32 %v896, %v1107
        %v1131 = vadd.f32 %v897, %v1107
        %v1132 = vadd.f32 %v898, %v1107
        %v1133 = vadd.f32 %v899, %v1115
        %v1134 = vadd.f32 %v900, %v1116
        %v1135 = vadd.f32 %v901, %v1117
        %v1136 = vadd.f32 %v902, %v1113
        %v1137 = vmul.f32 %v135, 0.056551103
        %1139 = vrot.lane.b32.xlu0 0.0, 74
        %v1140 = vpop.permute.xlu0 %1139
        %1141 = vrot.lane.b32.xlu0 %v1137, 74
        %v1142 = vpop.permute.xlu0 %1141
        %vm1143 = vcmask 605184
        %v1144 = vsel %vm1143, %v1140, %v1142
        %v1148 = vadd.f32 %v968, %v1140
        %v1149 = vadd.f32 %v969, %v1140
        %v1150 = vadd.f32 %v970, %v1140
        %v1151 = vadd.f32 %v971, %v1140
        %v1152 = vadd.f32 %v972, %v1140
        %v1153 = vadd.f32 %v973, %v1140
        %v1154 = vadd.f32 %v974, %v1140
        %v1155 = vadd.f32 %v975, %v1140
        %v1156 = vadd.f32 %v976, %v1140
        %v1157 = vadd.f32 %v977, %v1140
        %v1158 = vadd.f32 %v978, %v1140
        %v1159 = vadd.f32 %v979, %v1140
        %v1160 = vadd.f32 %v980, %v1140
        %v1161 = vadd.f32 %v981, %v1140
        %v1162 = vadd.f32 %v982, %v1144
        %v1163 = vadd.f32 %v983, %v1142
        %1178 = vrot.lane.b32.xlu0 %v1123, 26
        %v1179 = vpop.permute.xlu0 %1178
        %1180 = vrot.lane.b32.xlu0 %v1124, 26
        %v1181 = vpop.permute.xlu0 %1180
        %1182 = vrot.lane.b32.xlu0 %v1125, 26
        %v1183 = vpop.permute.xlu0 %1182
        %1184 = vrot.lane.b32.xlu0 %v1126, 26
        %v1185 = vpop.permute.xlu0 %1184
        %1186 = vrot.lane.b32.xlu0 %v1127, 26
        %v1187 = vpop.permute.xlu0 %1186
        %1188 = vrot.lane.b32.xlu0 %v1128, 26
        %v1189 = vpop.permute.xlu0 %1188
        %1190 = vrot.lane.b32.xlu0 %v1129, 26
        %v1191 = vpop.permute.xlu0 %1190
        %1192 = vrot.lane.b32.xlu0 %v1130, 26
        %v1193 = vpop.permute.xlu0 %1192
        %1194 = vrot.lane.b32.xlu0 %v1131, 26
        %v1195 = vpop.permute.xlu0 %1194
        %1196 = vrot.lane.b32.xlu0 %v1132, 26
        %v1197 = vpop.permute.xlu0 %1196
        %1198 = vrot.lane.b32.xlu0 %v1133, 26
        %v1199 = vpop.permute.xlu0 %1198
        %1200 = vrot.lane.b32.xlu0 %v1134, 26
        %v1201 = vpop.permute.xlu0 %1200
        %1202 = vrot.lane.b32.xlu0 %v1135, 26
        %v1203 = vpop.permute.xlu0 %1202
        %1204 = vrot.lane.b32.xlu0 %v1136, 26
        %v1205 = vpop.permute.xlu0 %1204
        %vm1206 = vcmask 211968
        %v1207 = vsel %vm1206, %v1179, %v1179
        %v1208 = vsel %vm1206, %v1179, %v1181
        %v1209 = vsel %vm1206, %v1181, %v1183
        %v1210 = vsel %vm1206, %v1183, %v1185
        %v1211 = vsel %vm1206, %v1185, %v1187
        %v1212 = vsel %vm1206, %v1187, %v1189
        %v1213 = vsel %vm1206, %v1189, %v1191
        %v1214 = vsel %vm1206, %v1191, %v1193
        %v1215 = vsel %vm1206, %v1193, %v1195
        %v1216 = vsel %vm1206, %v1195, %v1197
        %v1217 = vsel %vm1206, %v1197, %v1199
        %v1218 = vsel %vm1206, %v1199, %v1201
        %v1219 = vsel %vm1206, %v1201, %v1203
        %v1220 = vsel %vm1206, %v1203, %v1205
        %v1236 = vadd.f32 %v1084, %v1179
        %v1237 = vadd.f32 %v1084, %v1207
        %v1238 = vadd.f32 %v1085, %v1179
        %v1239 = vadd.f32 %v1086, %v1179
        %v1240 = vadd.f32 %v1087, %v1208
        %v1241 = vadd.f32 %v1088, %v1209
        %v1242 = vadd.f32 %v1089, %v1210
        %v1243 = vadd.f32 %v1090, %v1211
        %v1244 = vadd.f32 %v1091, %v1212
        %v1245 = vadd.f32 %v1092, %v1213
        %v1246 = vadd.f32 %v1093, %v1214
        %v1247 = vadd.f32 %v1094, %v1215
        %v1248 = vadd.f32 %v1095, %v1216
        %v1249 = vadd.f32 %v1096, %v1217
        %v1250 = vadd.f32 %v1097, %v1218
        %v1251 = vadd.f32 %v1098, %v1219
        %v1252 = vadd.f32 %v1099, %v1220
        %1266 = vrot.lane.b32.xlu0 %v1036, 62
        %v1267 = vpop.permute.xlu0 %1266
        %1268 = vrot.lane.b32.xlu0 %v1037, 62
        %v1269 = vpop.permute.xlu0 %1268
        %1270 = vrot.lane.b32.xlu0 %v1038, 62
        %v1271 = vpop.permute.xlu0 %1270
        %1272 = vrot.lane.b32.xlu0 %v1039, 62
        %v1273 = vpop.permute.xlu0 %1272
        %1274 = vrot.lane.b32.xlu0 %v1040, 62
        %v1275 = vpop.permute.xlu0 %1274
        %1276 = vrot.lane.b32.xlu0 %v1041, 62
        %v1277 = vpop.permute.xlu0 %1276
        %1278 = vrot.lane.b32.xlu0 %v1042, 62
        %v1279 = vpop.permute.xlu0 %1278
        %1280 = vrot.lane.b32.xlu0 %v1043, 62
        %v1281 = vpop.permute.xlu0 %1280
        %1282 = vrot.lane.b32.xlu0 %v1044, 62
        %v1283 = vpop.permute.xlu0 %1282
        %1284 = vrot.lane.b32.xlu0 %v1045, 62
        %v1285 = vpop.permute.xlu0 %1284
        %1286 = vrot.lane.b32.xlu0 %v1046, 62
        %v1287 = vpop.permute.xlu0 %1286
        %1288 = vrot.lane.b32.xlu0 %v1047, 62
        %v1289 = vpop.permute.xlu0 %1288
        %1290 = vrot.lane.b32.xlu0 %v1048, 62
        %v1291 = vpop.permute.xlu0 %1290
        %vm1292 = vcmask 506880
        %v1293 = vsel %vm1292, %v1267, %v1267
        %v1294 = vsel %vm1292, %v1267, %v1269
        %v1295 = vsel %vm1292, %v1269, %v1271
        %v1296 = vsel %vm1292, %v1271, %v1273
        %v1297 = vsel %vm1292, %v1273, %v1275
        %v1298 = vsel %vm1292, %v1275, %v1277
        %v1299 = vsel %vm1292, %v1277, %v1279
        %v1300 = vsel %vm1292, %v1279, %v1281
        %v1301 = vsel %vm1292, %v1281, %v1283
        %v1302 = vsel %vm1292, %v1283, %v1285
        %v1303 = vsel %vm1292, %v1285, %v1287
        %v1304 = vsel %vm1292, %v1287, %v1289
        %v1305 = vsel %vm1292, %v1289, %v1291
        %v1321 = vadd.f32 %v1148, %v1293
        %v1322 = vadd.f32 %v1148, %v1267
        %v1323 = vadd.f32 %v1149, %v1267
        %v1324 = vadd.f32 %v1150, %v1267
        %v1325 = vadd.f32 %v1151, %v1294
        %v1326 = vadd.f32 %v1152, %v1295
        %v1327 = vadd.f32 %v1153, %v1296
        %v1328 = vadd.f32 %v1154, %v1297
        %v1329 = vadd.f32 %v1155, %v1298
        %v1330 = vadd.f32 %v1156, %v1299
        %v1331 = vadd.f32 %v1157, %v1300
        %v1332 = vadd.f32 %v1158, %v1301
        %v1333 = vadd.f32 %v1159, %v1302
        %v1334 = vadd.f32 %v1160, %v1303
        %v1335 = vadd.f32 %v1161, %v1304
        %v1336 = vadd.f32 %v1162, %v1305
        %v1337 = vadd.f32 %v1163, %v1291
        %1355 = vrot.lane.b32.xlu0 %v1321, 79
        %v1356 = vpop.permute.xlu0 %1355
        %1357 = vrot.lane.b32.xlu0 %v1322, 79
        %v1358 = vpop.permute.xlu0 %1357
        %1359 = vrot.lane.b32.xlu0 %v1323, 79
        %v1360 = vpop.permute.xlu0 %1359
        %1361 = vrot.lane.b32.xlu0 %v1324, 79
        %v1362 = vpop.permute.xlu0 %1361
        %1363 = vrot.lane.b32.xlu0 %v1325, 79
        %v1364 = vpop.permute.xlu0 %1363
        %1365 = vrot.lane.b32.xlu0 %v1326, 79
        %v1366 = vpop.permute.xlu0 %1365
        %1367 = vrot.lane.b32.xlu0 %v1327, 79
        %v1368 = vpop.permute.xlu0 %1367
        %1369 = vrot.lane.b32.xlu0 %v1328, 79
        %v1370 = vpop.permute.xlu0 %1369
        %1371 = vrot.lane.b32.xlu0 %v1329, 79
        %v1372 = vpop.permute.xlu0 %1371
        %1373 = vrot.lane.b32.xlu0 %v1330, 79
        %v1374 = vpop.permute.xlu0 %1373
        %1375 = vrot.lane.b32.xlu0 %v1331, 79
        %v1376 = vpop.permute.xlu0 %1375
        %1377 = vrot.lane.b32.xlu0 %v1332, 79
        %v1378 = vpop.permute.xlu0 %1377
        %1379 = vrot.lane.b32.xlu0 %v1333, 79
        %v1380 = vpop.permute.xlu0 %1379
        %1381 = vrot.lane.b32.xlu0 %v1334, 79
        %v1382 = vpop.permute.xlu0 %1381
        %1383 = vrot.lane.b32.xlu0 %v1335, 79
        %v1384 = vpop.permute.xlu0 %1383
        %1385 = vrot.lane.b32.xlu0 %v1336, 79
        %v1386 = vpop.permute.xlu0 %1385
        %1387 = vrot.lane.b32.xlu0 %v1337, 79
        %v1388 = vpop.permute.xlu0 %1387
        %v1389 = vsel %vm623, %v1356, %v1358
        %v1390 = vsel %vm623, %v1358, %v1360
        %v1391 = vsel %vm623, %v1360, %v1362
        %v1392 = vsel %vm623, %v1362, %v1364
        %v1393 = vsel %vm623, %v1364, %v1366
        %v1394 = vsel %vm623, %v1366, %v1368
        %v1395 = vsel %vm623, %v1368, %v1370
        %v1396 = vsel %vm623, %v1370, %v1372
        %v1397 = vsel %vm623, %v1372, %v1374
        %v1398 = vsel %vm623, %v1374, %v1376
        %v1399 = vsel %vm623, %v1376, %v1378
        %v1400 = vsel %vm623, %v1378, %v1380
        %v1401 = vsel %vm623, %v1380, %v1382
        %v1402 = vsel %vm623, %v1382, %v1384
        %v1403 = vsel %vm623, %v1384, %v1386
        %v1404 = vsel %vm623, %v1386, %v1388
        %v1422 = vadd.f32 %v1236, %v1356
        %v1423 = vadd.f32 %v1237, %v1389
        %v1424 = vadd.f32 %v1238, %v1390
        %v1425 = vadd.f32 %v1239, %v1391
        %v1426 = vadd.f32 %v1240, %v1392
        %v1427 = vadd.f32 %v1241, %v1393
        %v1428 = vadd.f32 %v1242, %v1394
        %v1429 = vadd.f32 %v1243, %v1395
        %v1430 = vadd.f32 %v1244, %v1396
        %v1431 = vadd.f32 %v1245, %v1397
        %v1432 = vadd.f32 %v1246, %v1398
        %v1433 = vadd.f32 %v1247, %v1399
        %v1434 = vadd.f32 %v1248, %v1400
        %v1435 = vadd.f32 %v1249, %v1401
        %v1436 = vadd.f32 %v1250, %v1402
        %v1437 = vadd.f32 %v1251, %v1403
        %v1438 = vadd.f32 %v1252, %v1404
        %v1439 = vmul.f32 %v152, 0.22738633
        %v1440 = vmul.f32 %v153, 0.22738633
        %v1441 = vmul.f32 %v154, 0.22738633
        %v1442 = vmul.f32 %v155, 0.22738633
        %v1443 = vmul.f32 %v156, 0.22738633
        %v1444 = vmul.f32 %v157, 0.22738633
        %v1445 = vmul.f32 %v158, 0.22738633
        %v1446 = vmul.f32 %v159, 0.22738633
        %v1447 = vmul.f32 %v160, 0.22738633
        %v1448 = vmul.f32 %v161, 0.22738633
        %v1449 = vmul.f32 %v162, 0.22738633
        %v1450 = vmul.f32 %v163, 0.22738633
        %v1451 = vmul.f32 %v164, 0.22738633
        %v1452 = vmul.f32 %v165, 0.22738633
        %v1453 = vadd.f32 %v1439, 0.0
        %v1454 = vadd.f32 %v1440, 0.0
        %v1455 = vadd.f32 %v1441, 0.0
        %v1456 = vadd.f32 %v1442, 0.0
        %v1457 = vadd.f32 %v1443, 0.0
        %v1458 = vadd.f32 %v1444, 0.0
        %v1459 = vadd.f32 %v1445, 0.0
        %v1460 = vadd.f32 %v1446, 0.0
        %v1461 = vadd.f32 %v1447, 0.0
        %v1462 = vadd.f32 %v1448, 0.0
        %v1463 = vadd.f32 %v1449, 0.0
        %v1464 = vadd.f32 %v1450, 0.0
        %v1465 = vadd.f32 %v1451, 0.0
        %v1466 = vadd.f32 %v1452, 0.0
        %v1467 = vmul.f32 %v152, 0.18319273
        %v1468 = vmul.f32 %v153, 0.18319273
        %v1469 = vmul.f32 %v154, 0.18319273
        %v1470 = vmul.f32 %v155, 0.18319273
        %v1471 = vmul.f32 %v156, 0.18319273
        %v1472 = vmul.f32 %v157, 0.18319273
        %v1473 = vmul.f32 %v158, 0.18319273
        %v1474 = vmul.f32 %v159, 0.18319273
        %v1475 = vmul.f32 %v160, 0.18319273
        %v1476 = vmul.f32 %v161, 0.18319273
        %v1477 = vmul.f32 %v162, 0.18319273
        %v1478 = vmul.f32 %v163, 0.18319273
        %v1479 = vadd.f32 %v1467, 0.0
        %v1480 = vadd.f32 %v1468, 0.0
        %v1481 = vadd.f32 %v1469, 0.0
        %v1482 = vadd.f32 %v1470, 0.0
        %v1483 = vadd.f32 %v1471, 0.0
        %v1484 = vadd.f32 %v1472, 0.0
        %v1485 = vadd.f32 %v1473, 0.0
        %v1486 = vadd.f32 %v1474, 0.0
        %v1487 = vadd.f32 %v1475, 0.0
        %v1488 = vadd.f32 %v1476, 0.0
        %v1489 = vadd.f32 %v1477, 0.0
        %v1490 = vadd.f32 %v1478, 0.0
        %v1491 = vmul.f32 %v152, 0.14625141
        %v1492 = vmul.f32 %v153, 0.14625141
        %v1493 = vmul.f32 %v154, 0.14625141
        %v1494 = vmul.f32 %v155, 0.14625141
        %v1495 = vmul.f32 %v156, 0.14625141
        %v1496 = vmul.f32 %v157, 0.14625141
        %v1497 = vmul.f32 %v158, 0.14625141
        %v1498 = vmul.f32 %v159, 0.14625141
        %v1499 = vmul.f32 %v160, 0.14625141
        %v1500 = vmul.f32 %v161, 0.14625141
        %v1501 = vadd.f32 %v1491, 0.0
        %v1502 = vadd.f32 %v1492, 0.0
        %v1503 = vadd.f32 %v1493, 0.0
        %v1504 = vadd.f32 %v1494, 0.0
        %v1505 = vadd.f32 %v1495, 0.0
        %v1506 = vadd.f32 %v1496, 0.0
        %v1507 = vadd.f32 %v1497, 0.0
        %v1508 = vadd.f32 %v1498, 0.0
        %v1509 = vadd.f32 %v1499, 0.0
        %v1510 = vadd.f32 %v1500, 0.0
        %v1511 = vmul.f32 %v152, 0.1176666
        %v1512 = vmul.f32 %v153, 0.1176666
        %v1513 = vmul.f32 %v154, 0.1176666
        %v1514 = vmul.f32 %v155, 0.1176666
        %v1515 = vmul.f32 %v156, 0.1176666
        %v1516 = vmul.f32 %v157, 0.1176666
        %v1517 = vmul.f32 %v158, 0.1176666
        %v1518 = vadd.f32 %v1511, 0.0
        %v1519 = vadd.f32 %v1512, 0.0
        %v1520 = vadd.f32 %v1513, 0.0
        %v1521 = vadd.f32 %v1514, 0.0
        %v1522 = vadd.f32 %v1515, 0.0
        %v1523 = vadd.f32 %v1516, 0.0
        %v1524 = vadd.f32 %v1517, 0.0
        %v1525 = vmul.f32 %v152, 0.09193134
        %v1526 = vmul.f32 %v153, 0.09193134
        %v1527 = vmul.f32 %v154, 0.09193134
        %v1528 = vmul.f32 %v155, 0.09193134
        %v1529 = vmul.f32 %v156, 0.09193134
        %1535 = vrot.lane.b32.xlu0 0.0, 115
        %v1536 = vpop.permute.xlu0 %1535
        %1537 = vrot.lane.b32.xlu0 %v1525, 115
        %v1538 = vpop.permute.xlu0 %1537
        %1539 = vrot.lane.b32.xlu0 %v1526, 115
        %v1540 = vpop.permute.xlu0 %1539
        %1541 = vrot.lane.b32.xlu0 %v1527, 115
        %v1542 = vpop.permute.xlu0 %1541
        %1543 = vrot.lane.b32.xlu0 %v1528, 115
        %v1544 = vpop.permute.xlu0 %1543
        %1545 = vrot.lane.b32.xlu0 %v1529, 115
        %v1546 = vpop.permute.xlu0 %1545
        %vm1547 = vcmask 941056
        %v1548 = vsel %vm1547, %v1536, %v1538
        %v1549 = vsel %vm1547, %v1538, %v1540
        %v1550 = vsel %vm1547, %v1540, %v1542
        %v1551 = vsel %vm1547, %v1542, %v1544
        %v1552 = vsel %vm1547, %v1544, %v1546
        %v1560 = vadd.f32 %v1536, 0.0
        %v1561 = vadd.f32 %v1453, %v1536
        %v1562 = vadd.f32 %v1454, %v1536
        %v1563 = vadd.f32 %v1455, %v1536
        %v1564 = vadd.f32 %v1456, %v1536
        %v1565 = vadd.f32 %v1457, %v1536
        %v1566 = vadd.f32 %v1458, %v1536
        %v1567 = vadd.f32 %v1459, %v1536
        %v1568 = vadd.f32 %v1460, %v1536
        %v1569 = vadd.f32 %v1461, %v1548
        %v1570 = vadd.f32 %v1462, %v1549
        %v1571 = vadd.f32 %v1463, %v1550
        %v1572 = vadd.f32 %v1464, %v1551
        %v1573 = vadd.f32 %v1465, %v1552
        %v1574 = vadd.f32 %v1466, %v1546
        %v1575 = vmul.f32 %v152, 0.07202741
        %v1576 = vmul.f32 %v153, 0.07202741
        %v1577 = vmul.f32 %v154, 0.07202741
        %1581 = vrot.lane.b32.xlu0 0.0, 8
        %v1582 = vpop.permute.xlu0 %1581
        %1583 = vrot.lane.b32.xlu0 %v1575, 8
        %v1584 = vpop.permute.xlu0 %1583
        %1585 = vrot.lane.b32.xlu0 %v1576, 8
        %v1586 = vpop.permute.xlu0 %1585
        %1587 = vrot.lane.b32.xlu0 %v1577, 8
        %v1588 = vpop.permute.xlu0 %1587
        %vm1589 = vcmask 64512
        %v1590 = vsel %vm1589, %v1582, %v1584
        %v1591 = vsel %vm1589, %v1584, %v1586
        %v1592 = vsel %vm1589, %v1586, %v1588
        %v1597 = vadd.f32 %v1582, 0.0
        %v1598 = vadd.f32 %v1479, %v1582
        %v1599 = vadd.f32 %v1480, %v1582
        %v1600 = vadd.f32 %v1481, %v1582
        %v1601 = vadd.f32 %v1482, %v1582
        %v1602 = vadd.f32 %v1483, %v1582
        %v1603 = vadd.f32 %v1484, %v1582
        %v1604 = vadd.f32 %v1485, %v1582
        %v1605 = vadd.f32 %v1486, %v1582
        %v1606 = vadd.f32 %v1487, %v1582
        %v1607 = vadd.f32 %v1488, %v1590
        %v1608 = vadd.f32 %v1489, %v1591
        %v1609 = vadd.f32 %v1490, %v1592
        %1624 = vrot.lane.b32.xlu0 0.0, 37
        %v1625 = vpop.permute.xlu0 %1624
        %1626 = vrot.lane.b32.xlu0 %v1439, 37
        %v1627 = vpop.permute.xlu0 %1626
        %1628 = vrot.lane.b32.xlu0 %v1440, 37
        %v1629 = vpop.permute.xlu0 %1628
        %1630 = vrot.lane.b32.xlu0 %v1441, 37
        %v1631 = vpop.permute.xlu0 %1630
        %1632 = vrot.lane.b32.xlu0 %v1442, 37
        %v1633 = vpop.permute.xlu0 %1632
        %1634 = vrot.lane.b32.xlu0 %v1443, 37
        %v1635 = vpop.permute.xlu0 %1634
        %1636 = vrot.lane.b32.xlu0 %v1444, 37
        %v1637 = vpop.permute.xlu0 %1636
        %1638 = vrot.lane.b32.xlu0 %v1445, 37
        %v1639 = vpop.permute.xlu0 %1638
        %1640 = vrot.lane.b32.xlu0 %v1446, 37
        %v1641 = vpop.permute.xlu0 %1640
        %1642 = vrot.lane.b32.xlu0 %v1447, 37
        %v1643 = vpop.permute.xlu0 %1642
        %1644 = vrot.lane.b32.xlu0 %v1448, 37
        %v1645 = vpop.permute.xlu0 %1644
        %1646 = vrot.lane.b32.xlu0 %v1449, 37
        %v1647 = vpop.permute.xlu0 %1646
        %1648 = vrot.lane.b32.xlu0 %v1450, 37
        %v1649 = vpop.permute.xlu0 %1648
        %1650 = vrot.lane.b32.xlu0 %v1451, 37
        %v1651 = vpop.permute.xlu0 %1650
        %1652 = vrot.lane.b32.xlu0 %v1452, 37
        %v1653 = vpop.permute.xlu0 %1652
        %vm1654 = vcmask 302080
        %v1655 = vsel %vm1654, %v1625, %v1627
        %v1656 = vsel %vm1654, %v1627, %v1629
        %v1657 = vsel %vm1654, %v1629, %v1631
        %v1658 = vsel %vm1654, %v1631, %v1633
        %v1659 = vsel %vm1654, %v1633, %v1635
        %v1660 = vsel %vm1654, %v1635, %v1637
        %v1661 = vsel %vm1654, %v1637, %v1639
        %v1662 = vsel %vm1654, %v1639, %v1641
        %v1663 = vsel %vm1654, %v1641, %v1643
        %v1664 = vsel %vm1654, %v1643, %v1645
        %v1665 = vsel %vm1654, %v1645, %v1647
        %v1666 = vsel %vm1654, %v1647, %v1649
        %v1667 = vsel %vm1654, %v1649, %v1651
        %v1668 = vsel %vm1654, %v1651, %v1653
        %v1685 = vadd.f32 %v1625, 0.0
        %v1686 = vadd.f32 %v1655, 0.0
        %v1687 = vadd.f32 %v1656, 0.0
        %v1688 = vadd.f32 %v1657, 0.0
        %v1689 = vadd.f32 %v1658, 0.0
        %v1690 = vadd.f32 %v1659, 0.0
        %v1691 = vadd.f32 %v1501, %v1660
        %v1692 = vadd.f32 %v1502, %v1661
        %v1693 = vadd.f32 %v1503, %v1662
        %v1694 = vadd.f32 %v1504, %v1663
        %v1695 = vadd.f32 %v1505, %v1664
        %v1696 = vadd.f32 %v1506, %v1665
        %v1697 = vadd.f32 %v1507, %v1666
        %v1698 = vadd.f32 %v1508, %v1667
        %v1699 = vadd.f32 %v1509, %v1668
        %v1700 = vadd.f32 %v1510, %v1653
        %v1701 = vmul.f32 %v152, 0.18197021
        %v1702 = vmul.f32 %v153, 0.18197021
        %v1703 = vmul.f32 %v154, 0.18197021
        %v1704 = vmul.f32 %v155, 0.18197021
        %v1705 = vmul.f32 %v156, 0.18197021
        %v1706 = vmul.f32 %v157, 0.18197021
        %v1707 = vmul.f32 %v158, 0.18197021
        %v1708 = vmul.f32 %v159, 0.18197021
        %v1709 = vmul.f32 %v160, 0.18197021
        %v1710 = vmul.f32 %v161, 0.18197021
        %v1711 = vmul.f32 %v162, 0.18197021
        %v1712 = vmul.f32 %v163, 0.18197021
        %1725 = vrot.lane.b32.xlu0 0.0, 62
        %v1726 = vpop.permute.xlu0 %1725
        %1727 = vrot.lane.b32.xlu0 %v1701, 62
        %v1728 = vpop.permute.xlu0 %1727
        %1729 = vrot.lane.b32.xlu0 %v1702, 62
        %v1730 = vpop.permute.xlu0 %1729
        %1731 = vrot.lane.b32.xlu0 %v1703, 62
        %v1732 = vpop.permute.xlu0 %1731
        %1733 = vrot.lane.b32.xlu0 %v1704, 62
        %v1734 = vpop.permute.xlu0 %1733
        %1735 = vrot.lane.b32.xlu0 %v1705, 62
        %v1736 = vpop.permute.xlu0 %1735
        %1737 = vrot.lane.b32.xlu0 %v1706, 62
        %v1738 = vpop.permute.xlu0 %1737
        %1739 = vrot.lane.b32.xlu0 %v1707, 62
        %v1740 = vpop.permute.xlu0 %1739
        %1741 = vrot.lane.b32.xlu0 %v1708, 62
        %v1742 = vpop.permute.xlu0 %1741
        %1743 = vrot.lane.b32.xlu0 %v1709, 62
        %v1744 = vpop.permute.xlu0 %1743
        %1745 = vrot.lane.b32.xlu0 %v1710, 62
        %v1746 = vpop.permute.xlu0 %1745
        %1747 = vrot.lane.b32.xlu0 %v1711, 62
        %v1748 = vpop.permute.xlu0 %1747
        %1749 = vrot.lane.b32.xlu0 %v1712, 62
        %v1750 = vpop.permute.xlu0 %1749
        %v1751 = vsel %vm1292, %v1726, %v1728
        %v1752 = vsel %vm1292, %v1728, %v1730
        %v1753 = vsel %vm1292, %v1730, %v1732
        %v1754 = vsel %vm1292, %v1732, %v1734
        %v1755 = vsel %vm1292, %v1734, %v1736
        %v1756 = vsel %vm1292, %v1736, %v1738
        %v1757 = vsel %vm1292, %v1738, %v1740
        %v1758 = vsel %vm1292, %v1740, %v1742
        %v1759 = vsel %vm1292, %v1742, %v1744
        %v1760 = vsel %vm1292, %v1744, %v1746
        %v1761 = vsel %vm1292, %v1746, %v1748
        %v1762 = vsel %vm1292, %v1748, %v1750
        %v1776 = vadd.f32 %v1726, 0.0
        %v1777 = vadd.f32 %v1751, 0.0
        %v1778 = vadd.f32 %v1752, 0.0
        %v1779 = vadd.f32 %v1753, 0.0
        %v1780 = vadd.f32 %v1754, 0.0
        %v1781 = vadd.f32 %v1755, 0.0
        %v1782 = vadd.f32 %v1518, %v1756
        %v1783 = vadd.f32 %v1519, %v1757
        %v1784 = vadd.f32 %v1520, %v1758
        %v1785 = vadd.f32 %v1521, %v1759
        %v1786 = vadd.f32 %v1522, %v1760
        %v1787 = vadd.f32 %v1523, %v1761
        %v1788 = vadd.f32 %v1524, %v1762
        %v1789 = vmul.f32 %v152, 0.14626132
        %v1790 = vmul.f32 %v153, 0.14626132
        %v1791 = vmul.f32 %v154, 0.14626132
        %v1792 = vmul.f32 %v155, 0.14626132
        %v1793 = vmul.f32 %v156, 0.14626132
        %v1794 = vmul.f32 %v157, 0.14626132
        %v1795 = vmul.f32 %v158, 0.14626132
        %v1796 = vmul.f32 %v159, 0.14626132
        %v1797 = vmul.f32 %v160, 0.14626132
        %v1798 = vmul.f32 %v161, 0.14626132
        %1809 = vrot.lane.b32.xlu0 %v1789, 41
        %v1810 = vpop.permute.xlu0 %1809
        %1811 = vrot.lane.b32.xlu0 %v1790, 41
        %v1812 = vpop.permute.xlu0 %1811
        %1813 = vrot.lane.b32.xlu0 %v1791, 41
        %v1814 = vpop.permute.xlu0 %1813
        %1815 = vrot.lane.b32.xlu0 %v1792, 41
        %v1816 = vpop.permute.xlu0 %1815
        %1817 = vrot.lane.b32.xlu0 %v1793, 41
        %v1818 = vpop.permute.xlu0 %1817
        %1819 = vrot.lane.b32.xlu0 %v1794, 41
        %v1820 = vpop.permute.xlu0 %1819
        %1821 = vrot.lane.b32.xlu0 %v1795, 41
        %v1822 = vpop.permute.xlu0 %1821
        %1823 = vrot.lane.b32.xlu0 %v1796, 41
        %v1824 = vpop.permute.xlu0 %1823
        %1825 = vrot.lane.b32.xlu0 %v1797, 41
        %v1826 = vpop.permute.xlu0 %1825
        %1827 = vrot.lane.b32.xlu0 %v1798, 41
        %v1828 = vpop.permute.xlu0 %1827
        %v1829 = vsel %vm475, %v450, %v1810
        %v1830 = vsel %vm475, %v1810, %v1812
        %v1831 = vsel %vm475, %v1812, %v1814
        %v1832 = vsel %vm475, %v1814, %v1816
        %v1833 = vsel %vm475, %v1816, %v1818
        %v1834 = vsel %vm475, %v1818, %v1820
        %v1835 = vsel %vm475, %v1820, %v1822
        %v1836 = vsel %vm475, %v1822, %v1824
        %v1837 = vsel %vm475, %v1824, %v1826
        %v1838 = vsel %vm475, %v1826, %v1828
        %v1849 = vadd.f32 %v1560, %v450
        %v1850 = vadd.f32 %v1561, %v450
        %v1851 = vadd.f32 %v1562, %v450
        %v1852 = vadd.f32 %v1563, %v450
        %v1853 = vadd.f32 %v1564, %v450
        %v1854 = vadd.f32 %v1565, %v1829
        %v1855 = vadd.f32 %v1566, %v1830
        %v1856 = vadd.f32 %v1567, %v1831
        %v1857 = vadd.f32 %v1568, %v1832
        %v1858 = vadd.f32 %v1569, %v1833
        %v1859 = vadd.f32 %v1570, %v1834
        %v1860 = vadd.f32 %v1571, %v1835
        %v1861 = vadd.f32 %v1572, %v1836
        %v1862 = vadd.f32 %v1573, %v1837
        %v1863 = vadd.f32 %v1574, %v1838
        %v1864 = vmul.f32 %v152, 0.11516688
        %v1865 = vmul.f32 %v153, 0.11516688
        %v1866 = vmul.f32 %v154, 0.11516688
        %v1867 = vmul.f32 %v155, 0.11516688
        %v1868 = vmul.f32 %v156, 0.11516688
        %v1869 = vmul.f32 %v157, 0.11516688
        %v1870 = vmul.f32 %v158, 0.11516688
        %v1871 = vmul.f32 %v159, 0.11516688
        %1880 = vrot.lane.b32.xlu0 0.0, 34
        %v1881 = vpop.permute.xlu0 %1880
        %1882 = vrot.lane.b32.xlu0 %v1864, 34
        %v1883 = vpop.permute.xlu0 %1882
        %1884 = vrot.lane.b32.xlu0 %v1865, 34
        %v1885 = vpop.permute.xlu0 %1884
        %1886 = vrot.lane.b32.xlu0 %v1866, 34
        %v1887 = vpop.permute.xlu0 %1886
        %1888 = vrot.lane.b32.xlu0 %v1867, 34
        %v1889 = vpop.permute.xlu0 %1888
        %1890 = vrot.lane.b32.xlu0 %v1868, 34
        %v1891 = vpop.permute.xlu0 %1890
        %1892 = vrot.lane.b32.xlu0 %v1869, 34
        %v1893 = vpop.permute.xlu0 %1892
        %1894 = vrot.lane.b32.xlu0 %v1870, 34
        %v1895 = vpop.permute.xlu0 %1894
        %1896 = vrot.lane.b32.xlu0 %v1871, 34
        %v1897 = vpop.permute.xlu0 %1896
        %vm1898 = vcmask 277504
        %v1899 = vsel %vm1898, %v1881, %v1883
        %v1900 = vsel %vm1898, %v1883, %v1885
        %v1901 = vsel %vm1898, %v1885, %v1887
        %v1902 = vsel %vm1898, %v1887, %v1889
        %v1903 = vsel %vm1898, %v1889, %v1891
        %v1904 = vsel %vm1898, %v1891, %v1893
        %v1905 = vsel %vm1898, %v1893, %v1895
        %v1906 = vsel %vm1898, %v1895, %v1897
        %v1916 = vadd.f32 %v1597, %v1881
        %v1917 = vadd.f32 %v1598, %v1881
        %v1918 = vadd.f32 %v1599, %v1881
        %v1919 = vadd.f32 %v1600, %v1881
        %v1920 = vadd.f32 %v1601, %v1881
        %v1921 = vadd.f32 %v1602, %v1899
        %v1922 = vadd.f32 %v1603, %v1900
        %v1923 = vadd.f32 %v1604, %v1901
        %v1924 = vadd.f32 %v1605, %v1902
        %v1925 = vadd.f32 %v1606, %v1903
        %v1926 = vadd.f32 %v1607, %v1904
        %v1927 = vadd.f32 %v1608, %v1905
        %v1928 = vadd.f32 %v1609, %v1906
        %v1929 = vmul.f32 %v152, 0.091902696
        %v1930 = vmul.f32 %v153, 0.091902696
        %v1931 = vmul.f32 %v154, 0.091902696
        %v1932 = vmul.f32 %v155, 0.091902696
        %v1933 = vmul.f32 %v156, 0.091902696
        %1939 = vrot.lane.b32.xlu0 0.0, 68
        %v1940 = vpop.permute.xlu0 %1939
        %1941 = vrot.lane.b32.xlu0 %v1929, 68
        %v1942 = vpop.permute.xlu0 %1941
        %1943 = vrot.lane.b32.xlu0 %v1930, 68
        %v1944 = vpop.permute.xlu0 %1943
        %1945 = vrot.lane.b32.xlu0 %v1931, 68
        %v1946 = vpop.permute.xlu0 %1945
        %1947 = vrot.lane.b32.xlu0 %v1932, 68
        %v1948 = vpop.permute.xlu0 %1947
        %1949 = vrot.lane.b32.xlu0 %v1933, 68
        %v1950 = vpop.permute.xlu0 %1949
        %vm1951 = vcmask 556032
        %v1952 = vsel %vm1951, %v1940, %v1942
        %v1953 = vsel %vm1951, %v1942, %v1944
        %v1954 = vsel %vm1951, %v1944, %v1946
        %v1955 = vsel %vm1951, %v1946, %v1948
        %v1956 = vsel %vm1951, %v1948, %v1950
        %v1964 = vadd.f32 %v1685, %v1940
        %v1965 = vadd.f32 %v1686, %v1940
        %v1966 = vadd.f32 %v1687, %v1940
        %v1967 = vadd.f32 %v1688, %v1940
        %v1968 = vadd.f32 %v1689, %v1940
        %v1969 = vadd.f32 %v1690, %v1940
        %v1970 = vadd.f32 %v1691, %v1940
        %v1971 = vadd.f32 %v1692, %v1940
        %v1972 = vadd.f32 %v1693, %v1940
        %v1973 = vadd.f32 %v1694, %v1940
        %v1974 = vadd.f32 %v1695, %v1952
        %v1975 = vadd.f32 %v1696, %v1953
        %v1976 = vadd.f32 %v1697, %v1954
        %v1977 = vadd.f32 %v1698, %v1955
        %v1978 = vadd.f32 %v1699, %v1956
        %v1979 = vadd.f32 %v1700, %v1950
        %v1980 = vmul.f32 %v152, 0.07156476
        %v1981 = vmul.f32 %v153, 0.07156476
        %v1982 = vmul.f32 %v154, 0.07156476
        %1986 = vrot.lane.b32.xlu0 0.0, 58
        %v1987 = vpop.permute.xlu0 %1986
        %1988 = vrot.lane.b32.xlu0 %v1980, 58
        %v1989 = vpop.permute.xlu0 %1988
        %1990 = vrot.lane.b32.xlu0 %v1981, 58
        %v1991 = vpop.permute.xlu0 %1990
        %1992 = vrot.lane.b32.xlu0 %v1982, 58
        %v1993 = vpop.permute.xlu0 %1992
        %vm1994 = vcmask 474112
        %v1995 = vsel %vm1994, %v1987, %v1989
        %v1996 = vsel %vm1994, %v1989, %v1991
        %v1997 = vsel %vm1994, %v1991, %v1993
        %v2002 = vadd.f32 %v1776, %v1987
        %v2003 = vadd.f32 %v1777, %v1987
        %v2004 = vadd.f32 %v1778, %v1987
        %v2005 = vadd.f32 %v1779, %v1987
        %v2006 = vadd.f32 %v1780, %v1987
        %v2007 = vadd.f32 %v1781, %v1987
        %v2008 = vadd.f32 %v1782, %v1987
        %v2009 = vadd.f32 %v1783, %v1987
        %v2010 = vadd.f32 %v1784, %v1987
        %v2011 = vadd.f32 %v1785, %v1987
        %v2012 = vadd.f32 %v1786, %v1995
        %v2013 = vadd.f32 %v1787, %v1996
        %v2014 = vadd.f32 %v1788, %v1997
        %v2015 = vmul.f32 %v152, 0.057749044
        %2017 = vrot.lane.b32.xlu0 %v2015, 34
        %v2018 = vpop.permute.xlu0 %2017
        %v2019 = vsel %vm1898, %v1881, %v2018
        %v2021 = vadd.f32 %v1849, %v1881
        %v2022 = vadd.f32 %v1850, %v1881
        %v2023 = vadd.f32 %v1851, %v1881
        %v2024 = vadd.f32 %v1852, %v1881
        %v2025 = vadd.f32 %v1853, %v1881
        %v2026 = vadd.f32 %v1854, %v1881
        %v2027 = vadd.f32 %v1855, %v1881
        %v2028 = vadd.f32 %v1856, %v1881
        %v2029 = vadd.f32 %v1857, %v1881
        %v2030 = vadd.f32 %v1858, %v1881
        %v2031 = vadd.f32 %v1859, %v1881
        %v2032 = vadd.f32 %v1860, %v1881
        %v2033 = vadd.f32 %v1861, %v1881
        %v2034 = vadd.f32 %v1862, %v1881
        %v2035 = vadd.f32 %v1863, %v2019
        %2036 = vrot.lane.b32.xlu0 0.0, 104
        %v2037 = vpop.permute.xlu0 %2036
        %2038 = vrot.lane.b32.xlu0 %v1439, 104
        %v2039 = vpop.permute.xlu0 %2038
        %2040 = vrot.lane.b32.xlu0 %v1440, 104
        %v2041 = vpop.permute.xlu0 %2040
        %2042 = vrot.lane.b32.xlu0 %v1441, 104
        %v2043 = vpop.permute.xlu0 %2042
        %2044 = vrot.lane.b32.xlu0 %v1442, 104
        %v2045 = vpop.permute.xlu0 %2044
        %2046 = vrot.lane.b32.xlu0 %v1443, 104
        %v2047 = vpop.permute.xlu0 %2046
        %2048 = vrot.lane.b32.xlu0 %v1444, 104
        %v2049 = vpop.permute.xlu0 %2048
        %2050 = vrot.lane.b32.xlu0 %v1445, 104
        %v2051 = vpop.permute.xlu0 %2050
        %2052 = vrot.lane.b32.xlu0 %v1446, 104
        %v2053 = vpop.permute.xlu0 %2052
        %2054 = vrot.lane.b32.xlu0 %v1447, 104
        %v2055 = vpop.permute.xlu0 %2054
        %2056 = vrot.lane.b32.xlu0 %v1448, 104
        %v2057 = vpop.permute.xlu0 %2056
        %2058 = vrot.lane.b32.xlu0 %v1449, 104
        %v2059 = vpop.permute.xlu0 %2058
        %2060 = vrot.lane.b32.xlu0 %v1450, 104
        %v2061 = vpop.permute.xlu0 %2060
        %2062 = vrot.lane.b32.xlu0 %v1451, 104
        %v2063 = vpop.permute.xlu0 %2062
        %2064 = vrot.lane.b32.xlu0 %v1452, 104
        %v2065 = vpop.permute.xlu0 %2064
        %vm2066 = vcmask 850944
        %v2067 = vsel %vm2066, %v2037, %v2039
        %v2068 = vsel %vm2066, %v2039, %v2041
        %v2069 = vsel %vm2066, %v2041, %v2043
        %v2070 = vsel %vm2066, %v2043, %v2045
        %v2071 = vsel %vm2066, %v2045, %v2047
        %v2072 = vsel %vm2066, %v2047, %v2049
        %v2073 = vsel %vm2066, %v2049, %v2051
        %v2074 = vsel %vm2066, %v2051, %v2053
        %v2075 = vsel %vm2066, %v2053, %v2055
        %v2076 = vsel %vm2066, %v2055, %v2057
        %v2077 = vsel %vm2066, %v2057, %v2059
        %v2078 = vsel %vm2066, %v2059, %v2061
        %v2079 = vsel %vm2066, %v2061, %v2063
        %v2080 = vsel %vm2066, %v2063, %v2065
        %v2097 = vadd.f32 %v1916, %v2037
        %v2098 = vadd.f32 %v1916, %v2067
        %v2099 = vadd.f32 %v1916, %v2068
        %v2100 = vadd.f32 %v1916, %v2069
        %v2101 = vadd.f32 %v1917, %v2070
        %v2102 = vadd.f32 %v1918, %v2071
        %v2103 = vadd.f32 %v1919, %v2072
        %v2104 = vadd.f32 %v1920, %v2073
        %v2105 = vadd.f32 %v1921, %v2074
        %v2106 = vadd.f32 %v1922, %v2075
        %v2107 = vadd.f32 %v1923, %v2076
        %v2108 = vadd.f32 %v1924, %v2077
        %v2109 = vadd.f32 %v1925, %v2078
        %v2110 = vadd.f32 %v1926, %v2079
        %v2111 = vadd.f32 %v1927, %v2080
        %v2112 = vadd.f32 %v1928, %v2065
        %v2113 = vmul.f32 %v152, 0.17816046
        %v2114 = vmul.f32 %v153, 0.17816046
        %v2115 = vmul.f32 %v154, 0.17816046
        %v2116 = vmul.f32 %v155, 0.17816046
        %v2117 = vmul.f32 %v156, 0.17816046
        %v2118 = vmul.f32 %v157, 0.17816046
        %v2119 = vmul.f32 %v158, 0.17816046
        %v2120 = vmul.f32 %v159, 0.17816046
        %v2121 = vmul.f32 %v160, 0.17816046
        %v2122 = vmul.f32 %v161, 0.17816046
        %v2123 = vmul.f32 %v162, 0.17816046
        %v2124 = vmul.f32 %v163, 0.17816046
        %2137 = vrot.lane.b32.xlu0 0.0, 5
        %v2138 = vpop.permute.xlu0 %2137
        %2139 = vrot.lane.b32.xlu0 %v2113, 5
        %v2140 = vpop.permute.xlu0 %2139
        %2141 = vrot.lane.b32.xlu0 %v2114, 5
        %v2142 = vpop.permute.xlu0 %2141
        %2143 = vrot.lane.b32.xlu0 %v2115, 5
        %v2144 = vpop.permute.xlu0 %2143
        %2145 = vrot.lane.b32.xlu0 %v2116, 5
        %v2146 = vpop.permute.xlu0 %2145
        %2147 = vrot.lane.b32.xlu0 %v2117, 5
        %v2148 = vpop.permute.xlu0 %2147
        %2149 = vrot.lane.b32.xlu0 %v2118, 5
        %v2150 = vpop.permute.xlu0 %2149
        %2151 = vrot.lane.b32.xlu0 %v2119, 5
        %v2152 = vpop.permute.xlu0 %2151
        %2153 = vrot.lane.b32.xlu0 %v2120, 5
        %v2154 = vpop.permute.xlu0 %2153
        %2155 = vrot.lane.b32.xlu0 %v2121, 5
        %v2156 = vpop.permute.xlu0 %2155
        %2157 = vrot.lane.b32.xlu0 %v2122, 5
        %v2158 = vpop.permute.xlu0 %2157
        %2159 = vrot.lane.b32.xlu0 %v2123, 5
        %v2160 = vpop.permute.xlu0 %2159
        %2161 = vrot.lane.b32.xlu0 %v2124, 5
        %v2162 = vpop.permute.xlu0 %2161
        %vm2163 = vcmask 39936
        %v2164 = vsel %vm2163, %v2138, %v2140
        %v2165 = vsel %vm2163, %v2140, %v2142
        %v2166 = vsel %vm2163, %v2142, %v2144
        %v2167 = vsel %vm2163, %v2144, %v2146
        %v2168 = vsel %vm2163, %v2146, %v2148
        %v2169 = vsel %vm2163, %v2148, %v2150
        %v2170 = vsel %vm2163, %v2150, %v2152
        %v2171 = vsel %vm2163, %v2152, %v2154
        %v2172 = vsel %vm2163, %v2154, %v2156
        %v2173 = vsel %vm2163, %v2156, %v2158
        %v2174 = vsel %vm2163, %v2158, %v2160
        %v2175 = vsel %vm2163, %v2160, %v2162
        %v2189 = vadd.f32 %v1964, %v2138
        %v2190 = vadd.f32 %v1965, %v2138
        %v2191 = vadd.f32 %v1966, %v2138
        %v2192 = vadd.f32 %v1967, %v2138
        %v2193 = vadd.f32 %v1968, %v2164
        %v2194 = vadd.f32 %v1969, %v2165
        %v2195 = vadd.f32 %v1970, %v2166
        %v2196 = vadd.f32 %v1971, %v2167
        %v2197 = vadd.f32 %v1972, %v2168
        %v2198 = vadd.f32 %v1973, %v2169
        %v2199 = vadd.f32 %v1974, %v2170
        %v2200 = vadd.f32 %v1975, %v2171
        %v2201 = vadd.f32 %v1976, %v2172
        %v2202 = vadd.f32 %v1977, %v2173
        %v2203 = vadd.f32 %v1978, %v2174
        %v2204 = vadd.f32 %v1979, %v2175
        %v2205 = vmul.f32 %v152, 0.14378639
        %v2206 = vmul.f32 %v153, 0.14378639
        %v2207 = vmul.f32 %v154, 0.14378639
        %v2208 = vmul.f32 %v155, 0.14378639
        %v2209 = vmul.f32 %v156, 0.14378639
        %v2210 = vmul.f32 %v157, 0.14378639
        %v2211 = vmul.f32 %v158, 0.14378639
        %v2212 = vmul.f32 %v159, 0.14378639
        %v2213 = vmul.f32 %v160, 0.14378639
        %2223 = vrot.lane.b32.xlu0 %v2205, 5
        %v2224 = vpop.permute.xlu0 %2223
        %2225 = vrot.lane.b32.xlu0 %v2206, 5
        %v2226 = vpop.permute.xlu0 %2225
        %2227 = vrot.lane.b32.xlu0 %v2207, 5
        %v2228 = vpop.permute.xlu0 %2227
        %2229 = vrot.lane.b32.xlu0 %v2208, 5
        %v2230 = vpop.permute.xlu0 %2229
        %2231 = vrot.lane.b32.xlu0 %v2209, 5
        %v2232 = vpop.permute.xlu0 %2231
        %2233 = vrot.lane.b32.xlu0 %v2210, 5
        %v2234 = vpop.permute.xlu0 %2233
        %2235 = vrot.lane.b32.xlu0 %v2211, 5
        %v2236 = vpop.permute.xlu0 %2235
        %2237 = vrot.lane.b32.xlu0 %v2212, 5
        %v2238 = vpop.permute.xlu0 %2237
        %2239 = vrot.lane.b32.xlu0 %v2213, 5
        %v2240 = vpop.permute.xlu0 %2239
        %v2241 = vsel %vm2163, %v2138, %v2224
        %v2242 = vsel %vm2163, %v2224, %v2226
        %v2243 = vsel %vm2163, %v2226, %v2228
        %v2244 = vsel %vm2163, %v2228, %v2230
        %v2245 = vsel %vm2163, %v2230, %v2232
        %v2246 = vsel %vm2163, %v2232, %v2234
        %v2247 = vsel %vm2163, %v2234, %v2236
        %v2248 = vsel %vm2163, %v2236, %v2238
        %v2249 = vsel %vm2163, %v2238, %v2240
        %v2259 = vadd.f32 %v2002, %v2138
        %v2260 = vadd.f32 %v2003, %v2138
        %v2261 = vadd.f32 %v2004, %v2138
        %v2262 = vadd.f32 %v2005, %v2138
        %v2263 = vadd.f32 %v2006, %v2241
        %v2264 = vadd.f32 %v2007, %v2242
        %v2265 = vadd.f32 %v2008, %v2243
        %v2266 = vadd.f32 %v2009, %v2244
        %v2267 = vadd.f32 %v2010, %v2245
        %v2268 = vadd.f32 %v2011, %v2246
        %v2269 = vadd.f32 %v2012, %v2247
        %v2270 = vadd.f32 %v2013, %v2248
        %v2271 = vadd.f32 %v2014, %v2249
        %v2272 = vmul.f32 %v152, 0.11661237
        %v2273 = vmul.f32 %v153, 0.11661237
        %v2274 = vmul.f32 %v154, 0.11661237
        %v2275 = vmul.f32 %v155, 0.11661237
        %v2276 = vmul.f32 %v156, 0.11661237
        %v2277 = vmul.f32 %v157, 0.11661237
        %v2278 = vmul.f32 %v158, 0.11661237
        %2286 = vrot.lane.b32.xlu0 0.0, 12
        %v2287 = vpop.permute.xlu0 %2286
        %2288 = vrot.lane.b32.xlu0 %v2272, 12
        %v2289 = vpop.permute.xlu0 %2288
        %2290 = vrot.lane.b32.xlu0 %v2273, 12
        %v2291 = vpop.permute.xlu0 %2290
        %2292 = vrot.lane.b32.xlu0 %v2274, 12
        %v2293 = vpop.permute.xlu0 %2292
        %2294 = vrot.lane.b32.xlu0 %v2275, 12
        %v2295 = vpop.permute.xlu0 %2294
        %2296 = vrot.lane.b32.xlu0 %v2276, 12
        %v2297 = vpop.permute.xlu0 %2296
        %2298 = vrot.lane.b32.xlu0 %v2277, 12
        %v2299 = vpop.permute.xlu0 %2298
        %2300 = vrot.lane.b32.xlu0 %v2278, 12
        %v2301 = vpop.permute.xlu0 %2300
        %vm2302 = vcmask 97280
        %v2303 = vsel %vm2302, %v2287, %v2289
        %v2304 = vsel %vm2302, %v2289, %v2291
        %v2305 = vsel %vm2302, %v2291, %v2293
        %v2306 = vsel %vm2302, %v2293, %v2295
        %v2307 = vsel %vm2302, %v2295, %v2297
        %v2308 = vsel %vm2302, %v2297, %v2299
        %v2309 = vsel %vm2302, %v2299, %v2301
        %v2318 = vadd.f32 %v2021, %v2287
        %v2319 = vadd.f32 %v2022, %v2287
        %v2320 = vadd.f32 %v2023, %v2287
        %v2321 = vadd.f32 %v2024, %v2287
        %v2322 = vadd.f32 %v2025, %v2287
        %v2323 = vadd.f32 %v2026, %v2287
        %v2324 = vadd.f32 %v2027, %v2287
        %v2325 = vadd.f32 %v2028, %v2287
        %v2326 = vadd.f32 %v2029, %v2303
        %v2327 = vadd.f32 %v2030, %v2304
        %v2328 = vadd.f32 %v2031, %v2305
        %v2329 = vadd.f32 %v2032, %v2306
        %v2330 = vadd.f32 %v2033, %v2307
        %v2331 = vadd.f32 %v2034, %v2308
        %v2332 = vadd.f32 %v2035, %v2309
        %v2333 = vmul.f32 %v152, 0.09127008
        %v2334 = vmul.f32 %v153, 0.09127008
        %v2335 = vmul.f32 %v154, 0.09127008
        %v2336 = vmul.f32 %v155, 0.09127008
        %v2337 = vmul.f32 %v156, 0.09127008
        %2343 = vrot.lane.b32.xlu0 0.0, 25
        %v2344 = vpop.permute.xlu0 %2343
        %2345 = vrot.lane.b32.xlu0 %v2333, 25
        %v2346 = vpop.permute.xlu0 %2345
        %2347 = vrot.lane.b32.xlu0 %v2334, 25
        %v2348 = vpop.permute.xlu0 %2347
        %2349 = vrot.lane.b32.xlu0 %v2335, 25
        %v2350 = vpop.permute.xlu0 %2349
        %2351 = vrot.lane.b32.xlu0 %v2336, 25
        %v2352 = vpop.permute.xlu0 %2351
        %2353 = vrot.lane.b32.xlu0 %v2337, 25
        %v2354 = vpop.permute.xlu0 %2353
        %vm2355 = vcmask 203776
        %v2356 = vsel %vm2355, %v2344, %v2346
        %v2357 = vsel %vm2355, %v2346, %v2348
        %v2358 = vsel %vm2355, %v2348, %v2350
        %v2359 = vsel %vm2355, %v2350, %v2352
        %v2360 = vsel %vm2355, %v2352, %v2354
        %v2367 = vadd.f32 %v2097, %v2344
        %v2368 = vadd.f32 %v2098, %v2344
        %v2369 = vadd.f32 %v2099, %v2344
        %v2370 = vadd.f32 %v2100, %v2344
        %v2371 = vadd.f32 %v2101, %v2344
        %v2372 = vadd.f32 %v2102, %v2344
        %v2373 = vadd.f32 %v2103, %v2344
        %v2374 = vadd.f32 %v2104, %v2344
        %v2375 = vadd.f32 %v2105, %v2344
        %v2376 = vadd.f32 %v2106, %v2344
        %v2377 = vadd.f32 %v2107, %v2344
        %v2378 = vadd.f32 %v2108, %v2356
        %v2379 = vadd.f32 %v2109, %v2357
        %v2380 = vadd.f32 %v2110, %v2358
        %v2381 = vadd.f32 %v2111, %v2359
        %v2382 = vadd.f32 %v2112, %v2360
        %v2383 = vmul.f32 %v152, 0.07229692
        %v2384 = vmul.f32 %v153, 0.07229692
        %v2385 = vmul.f32 %v154, 0.07229692
        %2389 = vrot.lane.b32.xlu0 0.0, 10
        %v2390 = vpop.permute.xlu0 %2389
        %2391 = vrot.lane.b32.xlu0 %v2383, 10
        %v2392 = vpop.permute.xlu0 %2391
        %2393 = vrot.lane.b32.xlu0 %v2384, 10
        %v2394 = vpop.permute.xlu0 %2393
        %2395 = vrot.lane.b32.xlu0 %v2385, 10
        %v2396 = vpop.permute.xlu0 %2395
        %vm2397 = vcmask 80896
        %v2398 = vsel %vm2397, %v2390, %v2392
        %v2399 = vsel %vm2397, %v2392, %v2394
        %v2400 = vsel %vm2397, %v2394, %v2396
        %v2405 = vadd.f32 %v2189, %v2390
        %v2406 = vadd.f32 %v2190, %v2390
        %v2407 = vadd.f32 %v2191, %v2390
        %v2408 = vadd.f32 %v2192, %v2390
        %v2409 = vadd.f32 %v2193, %v2390
        %v2410 = vadd.f32 %v2194, %v2390
        %v2411 = vadd.f32 %v2195, %v2390
        %v2412 = vadd.f32 %v2196, %v2390
        %v2413 = vadd.f32 %v2197, %v2390
        %v2414 = vadd.f32 %v2198, %v2390
        %v2415 = vadd.f32 %v2199, %v2390
        %v2416 = vadd.f32 %v2200, %v2390
        %v2417 = vadd.f32 %v2201, %v2390
        %v2418 = vadd.f32 %v2202, %v2398
        %v2419 = vadd.f32 %v2203, %v2399
        %v2420 = vadd.f32 %v2204, %v2400
        %2437 = vrot.lane.b32.xlu0 %v2367, 21
        %v2438 = vpop.permute.xlu0 %2437
        %2439 = vrot.lane.b32.xlu0 %v2368, 21
        %v2440 = vpop.permute.xlu0 %2439
        %2441 = vrot.lane.b32.xlu0 %v2369, 21
        %v2442 = vpop.permute.xlu0 %2441
        %2443 = vrot.lane.b32.xlu0 %v2370, 21
        %v2444 = vpop.permute.xlu0 %2443
        %2445 = vrot.lane.b32.xlu0 %v2371, 21
        %v2446 = vpop.permute.xlu0 %2445
        %2447 = vrot.lane.b32.xlu0 %v2372, 21
        %v2448 = vpop.permute.xlu0 %2447
        %2449 = vrot.lane.b32.xlu0 %v2373, 21
        %v2450 = vpop.permute.xlu0 %2449
        %2451 = vrot.lane.b32.xlu0 %v2374, 21
        %v2452 = vpop.permute.xlu0 %2451
        %2453 = vrot.lane.b32.xlu0 %v2375, 21
        %v2454 = vpop.permute.xlu0 %2453
        %2455 = vrot.lane.b32.xlu0 %v2376, 21
        %v2456 = vpop.permute.xlu0 %2455
        %2457 = vrot.lane.b32.xlu0 %v2377, 21
        %v2458 = vpop.permute.xlu0 %2457
        %2459 = vrot.lane.b32.xlu0 %v2378, 21
        %v2460 = vpop.permute.xlu0 %2459
        %2461 = vrot.lane.b32.xlu0 %v2379, 21
        %v2462 = vpop.permute.xlu0 %2461
        %2463 = vrot.lane.b32.xlu0 %v2380, 21
        %v2464 = vpop.permute.xlu0 %2463
        %2465 = vrot.lane.b32.xlu0 %v2381, 21
        %v2466 = vpop.permute.xlu0 %2465
        %2467 = vrot.lane.b32.xlu0 %v2382, 21
        %v2468 = vpop.permute.xlu0 %2467
        %vm2469 = vcmask 171008
        %v2470 = vsel %vm2469, %v2438, %v2438
        %v2471 = vsel %vm2469, %v2438, %v2440
        %v2472 = vsel %vm2469, %v2440, %v2442
        %v2473 = vsel %vm2469, %v2442, %v2444
        %v2474 = vsel %vm2469, %v2444, %v2446
        %v2475 = vsel %vm2469, %v2446, %v2448
        %v2476 = vsel %vm2469, %v2448, %v2450
        %v2477 = vsel %vm2469, %v2450, %v2452
        %v2478 = vsel %vm2469, %v2452, %v2454
        %v2479 = vsel %vm2469, %v2454, %v2456
        %v2480 = vsel %vm2469, %v2456, %v2458
        %v2481 = vsel %vm2469, %v2458, %v2460
        %v2482 = vsel %vm2469, %v2460, %v2462
        %v2483 = vsel %vm2469, %v2462, %v2464
        %v2484 = vsel %vm2469, %v2464, %v2466
        %v2485 = vsel %vm2469, %v2466, %v2468
        %v2503 = vadd.f32 %v2318, %v2438
        %v2504 = vadd.f32 %v2318, %v2470
        %v2505 = vadd.f32 %v2318, %v2471
        %v2506 = vadd.f32 %v2319, %v2472
        %v2507 = vadd.f32 %v2320, %v2473
        %v2508 = vadd.f32 %v2321, %v2474
        %v2509 = vadd.f32 %v2322, %v2475
        %v2510 = vadd.f32 %v2323, %v2476
        %v2511 = vadd.f32 %v2324, %v2477
        %v2512 = vadd.f32 %v2325, %v2478
        %v2513 = vadd.f32 %v2326, %v2479
        %v2514 = vadd.f32 %v2327, %v2480
        %v2515 = vadd.f32 %v2328, %v2481
        %v2516 = vadd.f32 %v2329, %v2482
        %v2517 = vadd.f32 %v2330, %v2483
        %v2518 = vadd.f32 %v2331, %v2484
        %v2519 = vadd.f32 %v2332, %v2485
        %2533 = vrot.lane.b32.xlu0 %v2259, 24
        %v2534 = vpop.permute.xlu0 %2533
        %2535 = vrot.lane.b32.xlu0 %v2260, 24
        %v2536 = vpop.permute.xlu0 %2535
        %2537 = vrot.lane.b32.xlu0 %v2261, 24
        %v2538 = vpop.permute.xlu0 %2537
        %2539 = vrot.lane.b32.xlu0 %v2262, 24
        %v2540 = vpop.permute.xlu0 %2539
        %2541 = vrot.lane.b32.xlu0 %v2263, 24
        %v2542 = vpop.permute.xlu0 %2541
        %2543 = vrot.lane.b32.xlu0 %v2264, 24
        %v2544 = vpop.permute.xlu0 %2543
        %2545 = vrot.lane.b32.xlu0 %v2265, 24
        %v2546 = vpop.permute.xlu0 %2545
        %2547 = vrot.lane.b32.xlu0 %v2266, 24
        %v2548 = vpop.permute.xlu0 %2547
        %2549 = vrot.lane.b32.xlu0 %v2267, 24
        %v2550 = vpop.permute.xlu0 %2549
        %2551 = vrot.lane.b32.xlu0 %v2268, 24
        %v2552 = vpop.permute.xlu0 %2551
        %2553 = vrot.lane.b32.xlu0 %v2269, 24
        %v2554 = vpop.permute.xlu0 %2553
        %2555 = vrot.lane.b32.xlu0 %v2270, 24
        %v2556 = vpop.permute.xlu0 %2555
        %2557 = vrot.lane.b32.xlu0 %v2271, 24
        %v2558 = vpop.permute.xlu0 %2557
        %vm2559 = vcmask 195584
        %v2560 = vsel %vm2559, %v2534, %v2534
        %v2561 = vsel %vm2559, %v2534, %v2536
        %v2562 = vsel %vm2559, %v2536, %v2538
        %v2563 = vsel %vm2559, %v2538, %v2540
        %v2564 = vsel %vm2559, %v2540, %v2542
        %v2565 = vsel %vm2559, %v2542, %v2544
        %v2566 = vsel %vm2559, %v2544, %v2546
        %v2567 = vsel %vm2559, %v2546, %v2548
        %v2568 = vsel %vm2559, %v2548, %v2550
        %v2569 = vsel %vm2559, %v2550, %v2552
        %v2570 = vsel %vm2559, %v2552, %v2554
        %v2571 = vsel %vm2559, %v2554, %v2556
        %v2572 = vsel %vm2559, %v2556, %v2558
        %v2588 = vadd.f32 %v2405, %v2560
        %v2589 = vadd.f32 %v2405, %v2534
        %v2590 = vadd.f32 %v2406, %v2534
        %v2591 = vadd.f32 %v2407, %v2534
        %v2592 = vadd.f32 %v2408, %v2561
        %v2593 = vadd.f32 %v2409, %v2562
        %v2594 = vadd.f32 %v2410, %v2563
        %v2595 = vadd.f32 %v2411, %v2564
        %v2596 = vadd.f32 %v2412, %v2565
        %v2597 = vadd.f32 %v2413, %v2566
        %v2598 = vadd.f32 %v2414, %v2567
        %v2599 = vadd.f32 %v2415, %v2568
        %v2600 = vadd.f32 %v2416, %v2569
        %v2601 = vadd.f32 %v2417, %v2570
        %v2602 = vadd.f32 %v2418, %v2571
        %v2603 = vadd.f32 %v2419, %v2572
        %v2604 = vadd.f32 %v2420, %v2558
        %2622 = vrot.lane.b32.xlu0 %v2588, 55
        %v2623 = vpop.permute.xlu0 %2622
        %2624 = vrot.lane.b32.xlu0 %v2589, 55
        %v2625 = vpop.permute.xlu0 %2624
        %2626 = vrot.lane.b32.xlu0 %v2590, 55
        %v2627 = vpop.permute.xlu0 %2626
        %2628 = vrot.lane.b32.xlu0 %v2591, 55
        %v2629 = vpop.permute.xlu0 %2628
        %2630 = vrot.lane.b32.xlu0 %v2592, 55
        %v2631 = vpop.permute.xlu0 %2630
        %2632 = vrot.lane.b32.xlu0 %v2593, 55
        %v2633 = vpop.permute.xlu0 %2632
        %2634 = vrot.lane.b32.xlu0 %v2594, 55
        %v2635 = vpop.permute.xlu0 %2634
        %2636 = vrot.lane.b32.xlu0 %v2595, 55
        %v2637 = vpop.permute.xlu0 %2636
        %2638 = vrot.lane.b32.xlu0 %v2596, 55
        %v2639 = vpop.permute.xlu0 %2638
        %2640 = vrot.lane.b32.xlu0 %v2597, 55
        %v2641 = vpop.permute.xlu0 %2640
        %2642 = vrot.lane.b32.xlu0 %v2598, 55
        %v2643 = vpop.permute.xlu0 %2642
        %2644 = vrot.lane.b32.xlu0 %v2599, 55
        %v2645 = vpop.permute.xlu0 %2644
        %2646 = vrot.lane.b32.xlu0 %v2600, 55
        %v2647 = vpop.permute.xlu0 %2646
        %2648 = vrot.lane.b32.xlu0 %v2601, 55
        %v2649 = vpop.permute.xlu0 %2648
        %2650 = vrot.lane.b32.xlu0 %v2602, 55
        %v2651 = vpop.permute.xlu0 %2650
        %2652 = vrot.lane.b32.xlu0 %v2603, 55
        %v2653 = vpop.permute.xlu0 %2652
        %2654 = vrot.lane.b32.xlu0 %v2604, 55
        %v2655 = vpop.permute.xlu0 %2654
        %vm2656 = vcmask 449536
        %v2657 = vsel %vm2656, %v2623, %v2625
        %v2658 = vsel %vm2656, %v2625, %v2627
        %v2659 = vsel %vm2656, %v2627, %v2629
        %v2660 = vsel %vm2656, %v2629, %v2631
        %v2661 = vsel %vm2656, %v2631, %v2633
        %v2662 = vsel %vm2656, %v2633, %v2635
        %v2663 = vsel %vm2656, %v2635, %v2637
        %v2664 = vsel %vm2656, %v2637, %v2639
        %v2665 = vsel %vm2656, %v2639, %v2641
        %v2666 = vsel %vm2656, %v2641, %v2643
        %v2667 = vsel %vm2656, %v2643, %v2645
        %v2668 = vsel %vm2656, %v2645, %v2647
        %v2669 = vsel %vm2656, %v2647, %v2649
        %v2670 = vsel %vm2656, %v2649, %v2651
        %v2671 = vsel %vm2656, %v2651, %v2653
        %v2672 = vsel %vm2656, %v2653, %v2655
        %v2690 = vadd.f32 %v2503, %v2623
        %v2691 = vadd.f32 %v2504, %v2657
        %v2692 = vadd.f32 %v2505, %v2658
        %v2693 = vadd.f32 %v2506, %v2659
        %v2694 = vadd.f32 %v2507, %v2660
        %v2695 = vadd.f32 %v2508, %v2661
        %v2696 = vadd.f32 %v2509, %v2662
        %v2697 = vadd.f32 %v2510, %v2663
        %v2698 = vadd.f32 %v2511, %v2664
        %v2699 = vadd.f32 %v2512, %v2665
        %v2700 = vadd.f32 %v2513, %v2666
        %v2701 = vadd.f32 %v2514, %v2667
        %v2702 = vadd.f32 %v2515, %v2668
        %v2703 = vadd.f32 %v2516, %v2669
        %v2704 = vadd.f32 %v2517, %v2670
        %v2705 = vadd.f32 %v2518, %v2671
        %v2706 = vadd.f32 %v2519, %v2672
        %2724 = vrot.lane.b32.xlu0 %v1422, 47
        %v2725 = vpop.permute.xlu0 %2724
        %2726 = vrot.lane.b32.xlu0 %v1423, 47
        %v2727 = vpop.permute.xlu0 %2726
        %2728 = vrot.lane.b32.xlu0 %v1424, 47
        %v2729 = vpop.permute.xlu0 %2728
        %2730 = vrot.lane.b32.xlu0 %v1425, 47
        %v2731 = vpop.permute.xlu0 %2730
        %2732 = vrot.lane.b32.xlu0 %v1426, 47
        %v2733 = vpop.permute.xlu0 %2732
        %2734 = vrot.lane.b32.xlu0 %v1427, 47
        %v2735 = vpop.permute.xlu0 %2734
        %2736 = vrot.lane.b32.xlu0 %v1428, 47
        %v2737 = vpop.permute.xlu0 %2736
        %2738 = vrot.lane.b32.xlu0 %v1429, 47
        %v2739 = vpop.permute.xlu0 %2738
        %2740 = vrot.lane.b32.xlu0 %v1430, 47
        %v2741 = vpop.permute.xlu0 %2740
        %2742 = vrot.lane.b32.xlu0 %v1431, 47
        %v2743 = vpop.permute.xlu0 %2742
        %2744 = vrot.lane.b32.xlu0 %v1432, 47
        %v2745 = vpop.permute.xlu0 %2744
        %2746 = vrot.lane.b32.xlu0 %v1433, 47
        %v2747 = vpop.permute.xlu0 %2746
        %2748 = vrot.lane.b32.xlu0 %v1434, 47
        %v2749 = vpop.permute.xlu0 %2748
        %2750 = vrot.lane.b32.xlu0 %v1435, 47
        %v2751 = vpop.permute.xlu0 %2750
        %2752 = vrot.lane.b32.xlu0 %v1436, 47
        %v2753 = vpop.permute.xlu0 %2752
        %2754 = vrot.lane.b32.xlu0 %v1437, 47
        %v2755 = vpop.permute.xlu0 %2754
        %2756 = vrot.lane.b32.xlu0 %v1438, 47
        %v2757 = vpop.permute.xlu0 %2756
        %v2758 = vsel %vm277, %v2725, %v2727
        %v2759 = vsel %vm277, %v2727, %v2729
        %v2760 = vsel %vm277, %v2729, %v2731
        %v2761 = vsel %vm277, %v2731, %v2733
        %v2762 = vsel %vm277, %v2733, %v2735
        %v2763 = vsel %vm277, %v2735, %v2737
        %v2764 = vsel %vm277, %v2737, %v2739
        %v2765 = vsel %vm277, %v2739, %v2741
        %v2766 = vsel %vm277, %v2741, %v2743
        %v2767 = vsel %vm277, %v2743, %v2745
        %v2768 = vsel %vm277, %v2745, %v2747
        %v2769 = vsel %vm277, %v2747, %v2749
        %v2770 = vsel %vm277, %v2749, %v2751
        %v2771 = vsel %vm277, %v2751, %v2753
        %v2772 = vsel %vm277, %v2753, %v2755
        %v2773 = vsel %vm277, %v2755, %v2757
        %v2790 = vadd.f32 %v135, %v2758
        %v2791 = vadd.f32 %v136, %v2759
        %v2792 = vadd.f32 %v137, %v2760
        %v2793 = vadd.f32 %v138, %v2761
        %v2794 = vadd.f32 %v139, %v2762
        %v2795 = vadd.f32 %v140, %v2763
        %v2796 = vadd.f32 %v141, %v2764
        %v2797 = vadd.f32 %v142, %v2765
        %v2798 = vadd.f32 %v143, %v2766
        %v2799 = vadd.f32 %v144, %v2767
        %v2800 = vadd.f32 %v145, %v2768
        %v2801 = vadd.f32 %v146, %v2769
        %v2802 = vadd.f32 %v147, %v2770
        %v2803 = vadd.f32 %v148, %v2771
        %v2804 = vadd.f32 %v149, %v2772
        %v2805 = vadd.f32 %v150, %v2773
        %v2806 = vmul.f32 %v2690, 0.9
        %v2807 = vmul.f32 %v2691, 0.9
        %v2808 = vmul.f32 %v2692, 0.9
        %v2809 = vmul.f32 %v2693, 0.9
        %v2810 = vmul.f32 %v2694, 0.9
        %v2811 = vmul.f32 %v2695, 0.9
        %v2812 = vmul.f32 %v2696, 0.9
        %v2813 = vmul.f32 %v2697, 0.9
        %v2814 = vmul.f32 %v2698, 0.9
        %v2815 = vmul.f32 %v2699, 0.9
        %v2816 = vmul.f32 %v2700, 0.9
        %v2817 = vmul.f32 %v2701, 0.9
        %v2818 = vmul.f32 %v2702, 0.9
        %v2819 = vmul.f32 %v2703, 0.9
        %v2820 = vmul.f32 %v2704, 0.9
        %v2821 = vmul.f32 %v2705, 0.9
        %v2822 = vmul.f32 %v2706, 0.9
        %2840 = vrot.lane.b32.xlu0 %v2806, 60
        %v2841 = vpop.permute.xlu0 %2840
        %2842 = vrot.lane.b32.xlu0 %v2807, 60
        %v2843 = vpop.permute.xlu0 %2842
        %2844 = vrot.lane.b32.xlu0 %v2808, 60
        %v2845 = vpop.permute.xlu0 %2844
        %2846 = vrot.lane.b32.xlu0 %v2809, 60
        %v2847 = vpop.permute.xlu0 %2846
        %2848 = vrot.lane.b32.xlu0 %v2810, 60
        %v2849 = vpop.permute.xlu0 %2848
        %2850 = vrot.lane.b32.xlu0 %v2811, 60
        %v2851 = vpop.permute.xlu0 %2850
        %2852 = vrot.lane.b32.xlu0 %v2812, 60
        %v2853 = vpop.permute.xlu0 %2852
        %2854 = vrot.lane.b32.xlu0 %v2813, 60
        %v2855 = vpop.permute.xlu0 %2854
        %2856 = vrot.lane.b32.xlu0 %v2814, 60
        %v2857 = vpop.permute.xlu0 %2856
        %2858 = vrot.lane.b32.xlu0 %v2815, 60
        %v2859 = vpop.permute.xlu0 %2858
        %2860 = vrot.lane.b32.xlu0 %v2816, 60
        %v2861 = vpop.permute.xlu0 %2860
        %2862 = vrot.lane.b32.xlu0 %v2817, 60
        %v2863 = vpop.permute.xlu0 %2862
        %2864 = vrot.lane.b32.xlu0 %v2818, 60
        %v2865 = vpop.permute.xlu0 %2864
        %2866 = vrot.lane.b32.xlu0 %v2819, 60
        %v2867 = vpop.permute.xlu0 %2866
        %2868 = vrot.lane.b32.xlu0 %v2820, 60
        %v2869 = vpop.permute.xlu0 %2868
        %2870 = vrot.lane.b32.xlu0 %v2821, 60
        %v2871 = vpop.permute.xlu0 %2870
        %2872 = vrot.lane.b32.xlu0 %v2822, 60
        %v2873 = vpop.permute.xlu0 %2872
        %vm2874 = vcmask 490496
        %v2875 = vsel %vm2874, %v2841, %v2843
        %v2876 = vsel %vm2874, %v2843, %v2845
        %v2877 = vsel %vm2874, %v2845, %v2847
        %v2878 = vsel %vm2874, %v2847, %v2849
        %v2879 = vsel %vm2874, %v2849, %v2851
        %v2880 = vsel %vm2874, %v2851, %v2853
        %v2881 = vsel %vm2874, %v2853, %v2855
        %v2882 = vsel %vm2874, %v2855, %v2857
        %v2883 = vsel %vm2874, %v2857, %v2859
        %v2884 = vsel %vm2874, %v2859, %v2861
        %v2885 = vsel %vm2874, %v2861, %v2863
        %v2886 = vsel %vm2874, %v2863, %v2865
        %v2887 = vsel %vm2874, %v2865, %v2867
        %v2888 = vsel %vm2874, %v2867, %v2869
        %v2889 = vsel %vm2874, %v2869, %v2871
        %v2890 = vsel %vm2874, %v2871, %v2873
        %v2907 = vadd.f32 %v2790, %v2875
        %v2908 = vadd.f32 %v2791, %v2876
        %v2909 = vadd.f32 %v2792, %v2877
        %v2910 = vadd.f32 %v2793, %v2878
        %v2911 = vadd.f32 %v2794, %v2879
        %v2912 = vadd.f32 %v2795, %v2880
        %v2913 = vadd.f32 %v2796, %v2881
        %v2914 = vadd.f32 %v2797, %v2882
        %v2915 = vadd.f32 %v2798, %v2883
        %v2916 = vadd.f32 %v2799, %v2884
        %v2917 = vadd.f32 %v2800, %v2885
        %v2918 = vadd.f32 %v2801, %v2886
        %v2919 = vadd.f32 %v2802, %v2887
        %v2920 = vadd.f32 %v2803, %v2888
        %v2921 = vadd.f32 %v2804, %v2889
        %v2922 = vadd.f32 %v2805, %v2890
        %2923 = vst [vmem:[%s134] sm:$0xff] %v2907
        %2924 = vst [vmem:[%s134 + $0x8] sm:$0xff] %v2908
        %2925 = vst [vmem:[%s134 + $0x10] sm:$0xff] %v2909
        %2926 = vst [vmem:[%s134 + $0x18] sm:$0xff] %v2910
        %2927 = vst [vmem:[%s134 + $0x20] sm:$0xff] %v2911
        %2928 = vst [vmem:[%s134 + $0x28] sm:$0xff] %v2912
        %2929 = vst [vmem:[%s134 + $0x30] sm:$0xff] %v2913
        %2930 = vst [vmem:[%s134 + $0x38] sm:$0xff] %v2914
        %2931 = vst [vmem:[%s134 + $0x40] sm:$0xff] %v2915
        %2932 = vst [vmem:[%s134 + $0x48] sm:$0xff] %v2916
        %2933 = vst [vmem:[%s134 + $0x50] sm:$0xff] %v2917
        %2934 = vst [vmem:[%s134 + $0x58] sm:$0xff] %v2918
        %2935 = vst [vmem:[%s134 + $0x60] sm:$0xff] %v2919
        %2936 = vst [vmem:[%s134 + $0x68] sm:$0xff] %v2920
        %2937 = vst [vmem:[%s134 + $0x70] sm:$0xff] %v2921
        %2938 = vst [vmem:[%s134 + $0x78] sm:$0xff] %v2922
        %v2939 = vmul.f32 %v2690, 0.1
        %v2940 = vmul.f32 %v2691, 0.1
        %v2941 = vmul.f32 %v2692, 0.1
        %v2942 = vmul.f32 %v2693, 0.1
        %v2943 = vmul.f32 %v2694, 0.1
        %v2944 = vmul.f32 %v2695, 0.1
        %v2945 = vmul.f32 %v2696, 0.1
        %v2946 = vmul.f32 %v2697, 0.1
        %v2947 = vmul.f32 %v2698, 0.1
        %v2948 = vmul.f32 %v2699, 0.1
        %v2949 = vmul.f32 %v2700, 0.1
        %v2950 = vmul.f32 %v2701, 0.1
        %v2951 = vmul.f32 %v2702, 0.1
        %v2952 = vmul.f32 %v2703, 0.1
        %v2953 = vmul.f32 %v2704, 0.1
        %v2954 = vmul.f32 %v2705, 0.1
        %v2955 = vmul.f32 %v2706, 0.1
        %2973 = vrot.lane.b32.xlu0 %v2939, 60
        %v2974 = vpop.permute.xlu0 %2973
        %2975 = vrot.lane.b32.xlu0 %v2940, 60
        %v2976 = vpop.permute.xlu0 %2975
        %2977 = vrot.lane.b32.xlu0 %v2941, 60
        %v2978 = vpop.permute.xlu0 %2977
        %2979 = vrot.lane.b32.xlu0 %v2942, 60
        %v2980 = vpop.permute.xlu0 %2979
        %2981 = vrot.lane.b32.xlu0 %v2943, 60
        %v2982 = vpop.permute.xlu0 %2981
        %2983 = vrot.lane.b32.xlu0 %v2944, 60
        %v2984 = vpop.permute.xlu0 %2983
        %2985 = vrot.lane.b32.xlu0 %v2945, 60
        %v2986 = vpop.permute.xlu0 %2985
        %2987 = vrot.lane.b32.xlu0 %v2946, 60
        %v2988 = vpop.permute.xlu0 %2987
        %2989 = vrot.lane.b32.xlu0 %v2947, 60
        %v2990 = vpop.permute.xlu0 %2989
        %2991 = vrot.lane.b32.xlu0 %v2948, 60
        %v2992 = vpop.permute.xlu0 %2991
        %2993 = vrot.lane.b32.xlu0 %v2949, 60
        %v2994 = vpop.permute.xlu0 %2993
        %2995 = vrot.lane.b32.xlu0 %v2950, 60
        %v2996 = vpop.permute.xlu0 %2995
        %2997 = vrot.lane.b32.xlu0 %v2951, 60
        %v2998 = vpop.permute.xlu0 %2997
        %2999 = vrot.lane.b32.xlu0 %v2952, 60
        %v3000 = vpop.permute.xlu0 %2999
        %3001 = vrot.lane.b32.xlu0 %v2953, 60
        %v3002 = vpop.permute.xlu0 %3001
        %3003 = vrot.lane.b32.xlu0 %v2954, 60
        %v3004 = vpop.permute.xlu0 %3003
        %3005 = vrot.lane.b32.xlu0 %v2955, 60
        %v3006 = vpop.permute.xlu0 %3005
        %v3007 = vsel %vm2874, %v2974, %v2976
        %v3008 = vsel %vm2874, %v2976, %v2978
        %v3009 = vsel %vm2874, %v2978, %v2980
        %v3010 = vsel %vm2874, %v2980, %v2982
        %v3011 = vsel %vm2874, %v2982, %v2984
        %v3012 = vsel %vm2874, %v2984, %v2986
        %v3013 = vsel %vm2874, %v2986, %v2988
        %v3014 = vsel %vm2874, %v2988, %v2990
        %v3015 = vsel %vm2874, %v2990, %v2992
        %v3016 = vsel %vm2874, %v2992, %v2994
        %v3017 = vsel %vm2874, %v2994, %v2996
        %v3018 = vsel %vm2874, %v2996, %v2998
        %v3019 = vsel %vm2874, %v2998, %v3000
        %v3020 = vsel %vm2874, %v3000, %v3002
        %v3021 = vsel %vm2874, %v3002, %v3004
        %v3022 = vsel %vm2874, %v3004, %v3006
        %v3039 = vadd.f32 %v152, %v3007
        %v3040 = vadd.f32 %v153, %v3008
        %v3041 = vadd.f32 %v154, %v3009
        %v3042 = vadd.f32 %v155, %v3010
        %v3043 = vadd.f32 %v156, %v3011
        %v3044 = vadd.f32 %v157, %v3012
        %v3045 = vadd.f32 %v158, %v3013
        %v3046 = vadd.f32 %v159, %v3014
        %v3047 = vadd.f32 %v160, %v3015
        %v3048 = vadd.f32 %v161, %v3016
        %v3049 = vadd.f32 %v162, %v3017
        %v3050 = vadd.f32 %v163, %v3018
        %v3051 = vadd.f32 %v164, %v3019
        %v3052 = vadd.f32 %v165, %v3020
        %v3053 = vadd.f32 %v166, %v3021
        %v3054 = vadd.f32 %v167, %v3022
        %s3055 = scalar_lea.vmem %s134, 128 [#allocation5]
        %3056 = vst [vmem:[%s3055] sm:$0xff] %v3039
        %3057 = vst [vmem:[%s3055 + $0x8] sm:$0xff] %v3040
        %3058 = vst [vmem:[%s3055 + $0x10] sm:$0xff] %v3041
        %3059 = vst [vmem:[%s3055 + $0x18] sm:$0xff] %v3042
        %3060 = vst [vmem:[%s3055 + $0x20] sm:$0xff] %v3043
        %3061 = vst [vmem:[%s3055 + $0x28] sm:$0xff] %v3044
        %3062 = vst [vmem:[%s3055 + $0x30] sm:$0xff] %v3045
        %3063 = vst [vmem:[%s3055 + $0x38] sm:$0xff] %v3046
        %3064 = vst [vmem:[%s3055 + $0x40] sm:$0xff] %v3047
        %3065 = vst [vmem:[%s3055 + $0x48] sm:$0xff] %v3048
        %3066 = vst [vmem:[%s3055 + $0x50] sm:$0xff] %v3049
        %3067 = vst [vmem:[%s3055 + $0x58] sm:$0xff] %v3050
        %3068 = vst [vmem:[%s3055 + $0x60] sm:$0xff] %v3051
        %3069 = vst [vmem:[%s3055 + $0x68] sm:$0xff] %v3052
        %3070 = vst [vmem:[%s3055 + $0x70] sm:$0xff] %v3053
        %3071 = vst [vmem:[%s3055 + $0x78] sm:$0xff] %v3054
        %s3072 = sand.u32 %s52, 1
        %s3073 = scalar_lea.sflag [#allocation4], %s3072
        %s3074 = sand.u32 %s52, 1
        %s3075 = smul.addr %s3074, 256
        %s3076 = scalar_lea.vmem [#allocation5], %s3075
        // Predicated region
        $region29: #{tpu_custom_call.1} parent=23 // pred_check
          %p3077 = pneg %p62
        $region30: #{tpu_custom_call.1} parent=23 // pred_check_branch
          %3079 = sbr.rel (%p3077) target = $region32
        $region31: #{tpu_custom_call.1} parent=23 // pred_region
          %s3081 = ssub.s32 4096, 4096
          %3082 = vsyncadd %s3073, %s3081
          %s3083 = smul.addr %s18, 16
          %s3084 = smul.addr %s3083, 128
          %s3085 = scalar_lea.hbm %s1, %s3084
          %s3086 = sshll.u32 %s3076, 4
          %s3087 = int_to_ptr.vmem [resolvable:$true] %s3086
          %3092 = dma.vmem_to_hbm [thread:$0]  %s3087, 4096, %s3085, %s3073, 2048, 4096, 128
        $region32: #{tpu_custom_call.1} parent=23 // pred_fallthru
          _
      $region24: #{tpu_custom_call.1} parent=5 // pred_fallthru
        _
      %p3093 = scmp.le.s32.totalorder 2, %s13
      // Predicated region
      $region33: #{tpu_custom_call.1} parent=5 // pred_check
        %p3094 = pneg %p3093
      $region34: #{tpu_custom_call.1} parent=5 // pred_check_branch
        %3096 = sbr.rel (%p3094) target = $region36
      $region35: #{tpu_custom_call.1} parent=5 // pred_region
        %s3097 = ssub.s32 %s13, 2
        // Predicated region
        $region37: #{tpu_custom_call.1} parent=35 // pred_check
          %p3098 = pneg %p68
        $region38: #{tpu_custom_call.1} parent=35 // pred_check_branch
          %3100 = sbr.rel (%p3098) target = $region40
        $region39: #{tpu_custom_call.1} parent=35 // pred_region
          %s3101 = sand.u32 %s53, 1
          %s3102 = scalar_lea.sflag [#allocation4], %s3101
          %s3103 = sand.u32 %s53, 1
          %s3104 = smul.addr %s3103, 256
          %s3105 = scalar_lea.vmem [#allocation5], %s3104
          %3106 = dma.done %s3102, 4096
        $region40: #{tpu_custom_call.1} parent=35 // pred_fallthru
          _
      $region36: #{tpu_custom_call.1} parent=5 // pred_fallthru
        _
    $region6: #{tpu_custom_call.1} parent=1 // loop_footer
      %s17 = sadd.s32 1, %s13
    $region7: #{tpu_custom_call.1} parent=1 // loop_footer_branch
      %12 = sbr.rel target = $region3
    $region8: #{tpu_custom_call.1} parent=1 // loop_exit
      _
    %3107 = vsyncpa [#allocation3], 1
    %s3108 = scalar_lea.sflag [#allocation3], 1
    %3109 = vsyncpa %s3108, 1
    %3110 = vsyncpa [#allocation4], 1
    %s3111 = scalar_lea.sflag [#allocation4], 1
    %3112 = vsyncpa %s3111, 1

</llo_original>
